<compile_context>
chip_gen: v7x
topology: tpu7x:2x2x1
jax: 0.10.0
libtpu: 0.0.40
codegen_flags: <defaults>
</compile_context>

<pallas_src>
import functools

import jax
import jax.numpy as jnp
from jax import lax
from jax.experimental import pallas as pl
from jax.experimental.pallas import tpu as pltpu


# -----------------------------------------------------------------------------
# Fused kernel: window assembly + (depthwise x pointwise) folded MXU matmuls +
# bias + PReLU + pixel-shuffled store.  One grid step = th image rows of one
# batch element.
# -----------------------------------------------------------------------------
def _fused_upscale_kernel(top_ref, mid_ref, bot_ref, w_ref, b_ref, a_ref,
                          o_ref, xw_ref, *, f, r):
    # top_ref: (1, pad, W, Cin)   input rows [t*th - pad, t*th)          (junk at t == 0)
    # mid_ref: (1, th,  W, Cin)   input rows [t*th, (t+1)*th)
    # bot_ref: (1, pad, W, Cin)   input rows [(t+1)*th, (t+1)*th + pad)  (junk at t == T-1)
    # w_ref:   (f*f, Cin, r*r*n)  folded depthwise*pointwise weights (bf16)
    # b_ref:   (1, r*r*n)         pointwise bias with depthwise bias folded in (f32)
    # a_ref:   (1, r*r*n)         PReLU slopes tiled so col (i*r+j)*n + c -> alpha[c]
    # o_ref:   (1, th, r, W, r*n) pixel-shuffled output tile
    # xw_ref:  (th+2*pad, W+2*pad, Cin) zero-padded window scratch (compute dtype)
    t = pl.program_id(1)
    T = pl.num_programs(1)
    pad = top_ref.shape[1]
    th, W, Cin = mid_ref.shape[1], mid_ref.shape[2], mid_ref.shape[3]
    rn = o_ref.shape[4]
    rrn = r * rn
    cdt = xw_ref.dtype
    rows = th + 2 * pad

    # ---- assemble the zero-padded window in VMEM scratch ----------------------
    xw_ref[:, 0:pad, :] = jnp.zeros((rows, pad, Cin), cdt)          # left border
    xw_ref[:, pad + W:, :] = jnp.zeros((rows, pad, Cin), cdt)       # right border
    xw_ref[pad:pad + th, pad:pad + W, :] = mid_ref[0].astype(cdt)   # interior rows

    @pl.when(t == 0)                       # top halo = zero padding on first tile
    def _():
        xw_ref[0:pad, pad:pad + W, :] = jnp.zeros((pad, W, Cin), cdt)

    @pl.when(t > 0)
    def _():
        xw_ref[0:pad, pad:pad + W, :] = top_ref[0].astype(cdt)

    @pl.when(t == T - 1)                   # bottom halo = zero padding on last tile
    def _():
        xw_ref[pad + th:, pad:pad + W, :] = jnp.zeros((pad, W, Cin), cdt)

    @pl.when(t < T - 1)
    def _():
        xw_ref[pad + th:, pad:pad + W, :] = bot_ref[0].astype(cdt)

    # ---- separable conv folded onto the MXU (f^2 matmuls, f32 accumulate) -----
    acc = jnp.zeros((th * W, rrn), jnp.float32)
    for p in range(f):
        for q in range(f):
            tap = xw_ref[p:p + th, q:q + W, :].reshape(th * W, Cin)
            acc = acc + jnp.dot(tap, w_ref[p * f + q],
                                preferred_element_type=jnp.float32)

    # ---- bias + PReLU (f32 epilogue) + pixel-shuffled store -------------------
    y = acc + b_ref[...]
    y = jnp.where(y >= 0.0, y, a_ref[...] * y)
    for i in range(r):  # lane slice at i*(r*n): 128-aligned at production n=64, r=2
        o_ref[0, :, i, :, :] = (
            y[:, i * rn:(i + 1) * rn].reshape(th, W, rn).astype(o_ref.dtype))


# -----------------------------------------------------------------------------
# Tile-size selection from an explicit VMEM budget
# -----------------------------------------------------------------------------
def _vmem_estimate(th, W, Cin, r, n, f, in_bytes, out_bytes, cbytes):
    pad = f // 2
    rn, rrn = r * n, r * r * n
    blk_in = 2 * (th + 2 * pad) * W * Cin * in_bytes           # double-buffered mid + halos
    blk_out = 2 * th * r * W * rn * out_bytes                  # double-buffered output tile
    blk_w = 2 * (f * f * Cin * rrn * cbytes + 4 * rrn * 4)     # weights / bias / alpha
    scratch = (th + 2 * pad) * (W + 2 * pad) * Cin * cbytes    # window scratch
    live = th * W * (rrn * 4 + Cin * cbytes + rn * out_bytes)  # acc + tap + store temp
    return blk_in + blk_out + blk_w + scratch + live


def _pick_tiling(H, W, Cin, r, n, f, in_bytes, out_bytes, cbytes, budget, cap):
    """Returns (row_tile, padded_H)."""
    pad = max(f // 2, 1)
    cap = H if cap is None else max(1, min(int(cap), H))
    tb = max((cap // pad) * pad, pad)        # largest pad-aligned tile under budget
    while tb > pad and _vmem_estimate(tb, W, Cin, r, n, f,
                                      in_bytes, out_bytes, cbytes) > budget:
        tb -= pad
    # prefer a divisor of H (no padding needed), but never a pathologically tiny one
    for t_ in range(tb, 0, -1):
        if H % t_ == 0 and t_ % pad == 0 and 4 * t_ >= tb:
            return t_, H
    # awkward H (e.g. prime): pad H up to a multiple of the budgeted tile instead
    Hp = ((H + tb - 1) // tb) * tb
    return tb, Hp


# -----------------------------------------------------------------------------
# Wrapper
# -----------------------------------------------------------------------------
def upscale_block(x, dw_w, dw_b, pw_w, pw_b, alpha, scale, *,
                  row_tile=None, out_dtype=None, compute_dtype=jnp.bfloat16,
                  vmem_budget_bytes=None):
    """SwiftSRGAN UpscaleBlock forward (NHWC).

    x:     (N, H, W, n)          dw_w: (f, f, n)     dw_b: (n,)
    pw_w:  (n, scale^2*n)        pw_b: (scale^2*n,)  alpha: (n,)
    Returns (N, H*scale, W*scale, n) in `out_dtype` (default x.dtype; pass
    jnp.bfloat16 to halve the dominant output HBM stream when downstream allows).
    vmem_budget_bytes: default 40 MiB (v7x-safe, 64 MiB physical); raise toward
    ~96 MiB on v5e / v6e (128 MiB physical) for larger tiles / fewer grid steps.
    """
    N, H, W, Cin = x.shape
    r = int(scale)
    n = Cin
    f = dw_w.shape[0]
    rn, rrn = r * n, r * r * n
    assert f % 2 == 1 and f >= 3, "odd kernel size >= 3 expected (module default f=3)"
    assert dw_w.shape == (f, f, Cin) and dw_b.shape == (Cin,)
    assert pw_w.shape == (Cin, rrn) and pw_b.shape == (rrn,) and alpha.shape == (n,)

    pad = f // 2
    out_dtype = x.dtype if out_dtype is None else out_dtype
    in_bytes = jnp.dtype(x.dtype).itemsize
    out_bytes = jnp.dtype(out_dtype).itemsize
    cbytes = jnp.dtype(compute_dtype).itemsize
    budget = 40 * 2**20 if vmem_budget_bytes is None else int(vmem_budget_bytes)

    th, Hp = _pick_tiling(H, W, Cin, r, n, f, in_bytes, out_bytes, cbytes,
                          budget, row_tile)
    if Hp != H:  # rare fallback: pad H rather than collapsing to tiny tiles
        x = jnp.pad(x, ((0, 0), (0, Hp - H), (0, 0), (0, 0)))
    T = Hp // th
    thp = th // pad
    hlim = Hp // pad - 1

    # ---- fold depthwise weights/bias through the pointwise conv ---------------
    # PixelShuffle maps pointwise channel k = c*r^2 + i*r + j -> (c, i, j); reorder
    # columns to k' = (i*r + j)*n + c so an i-slice of the matmul output is exactly
    # the lane-contiguous (w, (j, c)) slab the shuffled store needs.
    pw32 = pw_w.astype(jnp.float32)
    pw_reord = jnp.transpose(pw32.reshape(Cin, n, r, r), (0, 2, 3, 1)).reshape(Cin, rrn)
    wfold = (dw_w.astype(jnp.float32).reshape(f * f, Cin, 1) * pw_reord[None]
             ).astype(compute_dtype)                                    # (f*f, Cin, r*r*n)
    b_eff = pw_b.astype(jnp.float32) + dw_b.astype(jnp.float32) @ pw32  # dw bias folded in
    b_reord = jnp.transpose(b_eff.reshape(n, r, r), (1, 2, 0)).reshape(1, rrn)
    alpha2 = jnp.tile(alpha.astype(jnp.float32), r * r).reshape(1, rrn)

    kernel = functools.partial(_fused_upscale_kernel, f=f, r=r)

    out = pl.pallas_call(
        kernel,
        out_shape=jax.ShapeDtypeStruct((N * T, th, r, W, rn), out_dtype),
        grid_spec=pltpu.PrefetchScalarGridSpec(
            num_scalar_prefetch=0,
            grid=(N, T),
            in_specs=[
                # top halo rows [t*th - pad, t*th); clamped (and masked) at t == 0
                pl.BlockSpec((1, pad, W, Cin),
                             lambda b, t: (b, jnp.maximum(t * thp - 1, 0), 0, 0)),
                # main th-row block
                pl.BlockSpec((1, th, W, Cin), lambda b, t: (b, t, 0, 0)),
                # bottom halo rows [(t+1)*th, (t+1)*th + pad); clamped/masked at t == T-1
                pl.BlockSpec((1, pad, W, Cin),
                             lambda b, t: (b, jnp.minimum((t + 1) * thp, hlim), 0, 0)),
                # resident weights / bias / slopes
                # TODO(synk): pipeline_mode=pl.Buffered(1) would drop their redundant
                # second buffer; negligible VMEM at these sizes, so left default.
                pl.BlockSpec((f * f, Cin, rrn), lambda b, t: (0, 0, 0)),
                pl.BlockSpec((1, rrn), lambda b, t: (0, 0)),
                pl.BlockSpec((1, rrn), lambda b, t: (0, 0)),
            ],
            out_specs=pl.BlockSpec((1, th, r, W, rn),
                                   lambda b, t: (b * T + t, 0, 0, 0, 0)),
            scratch_shapes=[pltpu.VMEM((th + 2 * pad, W + 2 * pad, Cin),
                                       compute_dtype)],
        ),
        compiler_params=pltpu.CompilerParams(
            # grid = (N, T): both independent -> megacore sharding on v7x
            dimension_semantics=("parallel", "parallel"),
            vmem_limit_bytes=min(budget + 24 * 2**20, 120 * 2**20),
        ),
    )(x, x, x, wfold, b_reord, alpha2)

    # Row-major order of (N*T, th, r, W, r*n) already equals pixel-shuffled NHWC,
    # so this reshape is contiguous (no extra HBM transpose pass).
    out = out.reshape(N, Hp * r, W * r, n)
    if Hp != H:
        out = out[:, :H * r]
    return out


# ------------------------------- plain-JAX reference --------------------------
def ref_upscale_block(x, dw_w, dw_b, pw_w, pw_b, alpha, scale):
    N, H, W, Cin = x.shape
    f = dw_w.shape[0]
    r = scale
    y = lax.conv_general_dilated(
        x, dw_w.reshape(f, f, 1, Cin), (1, 1), "SAME",
        dimension_numbers=("NHWC", "HWIO", "NHWC"),
        feature_group_count=Cin) + dw_b
    z = jnp.einsum("nhwc,ck->nhwk", y, pw_w) + pw_b          # k = c*r^2 + i*r + j
    z = z.reshape(N, H, W, Cin, r, r).transpose(0, 1, 4, 2, 5, 3)
    z = z.reshape(N, H * r, W * r, Cin)
    return jnp.where(z >= 0, z, alpha * z)                   # PReLU(n) after shuffle


if __name__ == "__main__":
    # Small, module-consistent shapes: n=8 channels, scale=2, f=3, 16x16 spatial.
    N, H, W = 2, 16, 16
    n_ch, scale, f = 8, 2, 3
    Cout = scale * scale * n_ch

    key = jax.random.PRNGKey(0)
    k1, k2, k3, k4, k5 = jax.random.split(key, 5)

    x = jax.random.normal(k1, (N, H, W, n_ch), jnp.float32)          # NHWC input
    dw_w = jax.random.normal(k2, (f, f, n_ch), jnp.float32) * 0.1    # depthwise weights
    dw_b = jax.random.normal(k3, (n_ch,), jnp.float32) * 0.1
    pw_w = jax.random.normal(k4, (n_ch, Cout), jnp.float32) * 0.1    # pointwise (Cin, Cout)
    pw_b = jax.random.normal(k5, (Cout,), jnp.float32) * 0.1
    alpha = jnp.full((n_ch,), 0.25, jnp.float32)                     # PReLU default init

    ref = ref_upscale_block(x, dw_w, dw_b, pw_w, pw_b, alpha, scale)

    # Forced 4-row tiles -> T=4 exercises first / interior / last-tile halo paths.
    out = upscale_block(x, dw_w, dw_b, pw_w, pw_b, alpha, scale, row_tile=4)
    out = jax.block_until_ready(out)
    assert out.shape == (N, H * scale, W * scale, n_ch), out.shape
    # bf16 MXU inputs with f32 accumulation -> small quantization error vs f32 ref.
    assert jnp.allclose(out, ref, atol=2e-2, rtol=2e-2), \
        float(jnp.max(jnp.abs(out - ref)))

    # Auto tile (whole image per step at this size) + bf16 output stream.
    out_bf16 = upscale_block(x, dw_w, dw_b, pw_w, pw_b, alpha, scale,
                             out_dtype=jnp.bfloat16)
    out_bf16 = jax.block_until_ready(out_bf16).astype(jnp.float32)
    assert jnp.allclose(out_bf16, ref, atol=5e-2, rtol=5e-2), \
        float(jnp.max(jnp.abs(out_bf16 - ref)))

    print("KERNEL_OK")
</pallas_src>

<mosaic_0001>
module attributes {stable_mosaic.version = 11 : i64} {
  func.func @_fused_upscale_kernel(%arg0: i32, %arg1: i32, %arg2: memref<1x1x16x8xf32, #tpu.memory_space<vmem>>, %arg3: memref<1x4x16x8xf32, #tpu.memory_space<vmem>>, %arg4: memref<1x1x16x8xf32, #tpu.memory_space<vmem>>, %arg5: memref<9x8x32xbf16, #tpu.memory_space<vmem>>, %arg6: memref<1x32xf32, #tpu.memory_space<vmem>>, %arg7: memref<1x32xf32, #tpu.memory_space<vmem>>, %arg8: memref<1x4x2x16x16xf32, #tpu.memory_space<vmem>>, %arg9: memref<6x18x8xbf16, #tpu.memory_space<vmem>>) attributes {dimension_semantics = [#tpu.dimension_semantics<parallel>, #tpu.dimension_semantics<parallel>], iteration_bounds = array<i64: 2, 4>, scalar_prefetch = 0 : i64, scratch_operands = 1 : i64, tpu.core_type = #tpu.core_type<tc>, window_params = [{transform_indices = @transform_0, window_bounds = array<i64: 1, 1, 16, 8>}, {transform_indices = @transform_1, window_bounds = array<i64: 1, 4, 16, 8>}, {transform_indices = @transform_2, window_bounds = array<i64: 1, 1, 16, 8>}, {pipeline_mode = #tpu.pipeline_mode<synchronous>, transform_indices = @transform_3, window_bounds = array<i64: 9, 8, 32>}, {pipeline_mode = #tpu.pipeline_mode<synchronous>, transform_indices = @transform_4, window_bounds = array<i64: 1, 32>}, {pipeline_mode = #tpu.pipeline_mode<synchronous>, transform_indices = @transform_5, window_bounds = array<i64: 1, 32>}, {transform_indices = @transform_6, window_bounds = array<i64: 1, 4, 2, 16, 16>}]} {
    %cst = arith.constant 0.000000e+00 : bf16
    %0 = vector.broadcast %cst : bf16 to vector<6x1x8xbf16>
    %c0 = arith.constant 0 : index
    %c0_0 = arith.constant 0 : index
    %c0_1 = arith.constant 0 : index
    %1 = vector.load %arg9[%c0, %c0_0, %c0_1] : memref<6x18x8xbf16, #tpu.memory_space<vmem>>, vector<6x1x8xbf16>
    tpu.vector_store %arg9[%c0, %c0_0, %c0_1], %0 {strides = array<i32>} : memref<6x18x8xbf16, #tpu.memory_space<vmem>>, vector<6x1x8xbf16>,
    %cst_2 = arith.constant 0.000000e+00 : bf16
    %2 = vector.broadcast %cst_2 : bf16 to vector<6x1x8xbf16>
    %c0_3 = arith.constant 0 : index
    %c17 = arith.constant 17 : index
    %c0_4 = arith.constant 0 : index
    %3 = vector.load %arg9[%c0_3, %c17, %c0_4] : memref<6x18x8xbf16, #tpu.memory_space<vmem>>, vector<6x1x8xbf16>
    tpu.vector_store %arg9[%c0_3, %c17, %c0_4], %2 {strides = array<i32>} : memref<6x18x8xbf16, #tpu.memory_space<vmem>>, vector<6x1x8xbf16>,
    %c0_5 = arith.constant 0 : index
    %c0_6 = arith.constant 0 : index
    %c0_7 = arith.constant 0 : index
    %c0_8 = arith.constant 0 : index
    %4 = vector.load %arg3[%c0_5, %c0_6, %c0_7, %c0_8] : memref<1x4x16x8xf32, #tpu.memory_space<vmem>>, vector<1x4x16x8xf32>
    %5 = vector.shape_cast %4 : vector<1x4x16x8xf32> to vector<4x16x8xf32>
    %6 = arith.truncf %5 : vector<4x16x8xf32> to vector<4x16x8xbf16>
    %c1 = arith.constant 1 : index
    %c1_9 = arith.constant 1 : index
    %c0_10 = arith.constant 0 : index
    %7 = vector.load %arg9[%c1, %c1_9, %c0_10] : memref<6x18x8xbf16, #tpu.memory_space<vmem>>, vector<4x16x8xbf16>
    tpu.vector_store %arg9[%c1, %c1_9, %c0_10], %6 {strides = array<i32>} : memref<6x18x8xbf16, #tpu.memory_space<vmem>>, vector<4x16x8xbf16>,
    %c0_i32 = arith.constant 0 : i32
    %8 = arith.cmpi eq, %arg1, %c0_i32 : i32
    %9 = arith.extui %8 : i1 to i32
    %c0_i32_11 = arith.constant 0 : i32
    %10 = arith.cmpi ne, %9, %c0_i32_11 : i32
    scf.if %10 {
      %cst_89 = arith.constant 0.000000e+00 : bf16
      %94 = vector.broadcast %cst_89 : bf16 to vector<1x16x8xbf16>
      %c0_90 = arith.constant 0 : index
      %c1_91 = arith.constant 1 : index
      %c0_92 = arith.constant 0 : index
      %95 = vector.load %arg9[%c0_90, %c1_91, %c0_92] : memref<6x18x8xbf16, #tpu.memory_space<vmem>>, vector<1x16x8xbf16>
      tpu.vector_store %arg9[%c0_90, %c1_91, %c0_92], %94 {strides = array<i32>} : memref<6x18x8xbf16, #tpu.memory_space<vmem>>, vector<1x16x8xbf16>,
    } else {
    }
    %c0_i32_12 = arith.constant 0 : i32
    %11 = arith.cmpi sgt, %arg1, %c0_i32_12 : i32
    %12 = arith.extui %11 : i1 to i32
    %c0_i32_13 = arith.constant 0 : i32
    %13 = arith.cmpi ne, %12, %c0_i32_13 : i32
    scf.if %13 {
      %c0_89 = arith.constant 0 : index
      %c0_90 = arith.constant 0 : index
      %c0_91 = arith.constant 0 : index
      %c0_92 = arith.constant 0 : index
      %94 = vector.load %arg2[%c0_89, %c0_90, %c0_91, %c0_92] : memref<1x1x16x8xf32, #tpu.memory_space<vmem>>, vector<1x1x16x8xf32>
      %95 = vector.shape_cast %94 : vector<1x1x16x8xf32> to vector<1x16x8xf32>
      %96 = arith.truncf %95 : vector<1x16x8xf32> to vector<1x16x8xbf16>
      %c0_93 = arith.constant 0 : index
      %c1_94 = arith.constant 1 : index
      %c0_95 = arith.constant 0 : index
      %97 = vector.load %arg9[%c0_93, %c1_94, %c0_95] : memref<6x18x8xbf16, #tpu.memory_space<vmem>>, vector<1x16x8xbf16>
      tpu.vector_store %arg9[%c0_93, %c1_94, %c0_95], %96 {strides = array<i32>} : memref<6x18x8xbf16, #tpu.memory_space<vmem>>, vector<1x16x8xbf16>,
    } else {
    }
    %c3_i32 = arith.constant 3 : i32
    %14 = arith.cmpi eq, %arg1, %c3_i32 : i32
    %15 = arith.extui %14 : i1 to i32
    %c0_i32_14 = arith.constant 0 : i32
    %16 = arith.cmpi ne, %15, %c0_i32_14 : i32
    scf.if %16 {
      %cst_89 = arith.constant 0.000000e+00 : bf16
      %94 = vector.broadcast %cst_89 : bf16 to vector<1x16x8xbf16>
      %c5_90 = arith.constant 5 : index
      %c1_91 = arith.constant 1 : index
      %c0_92 = arith.constant 0 : index
      %95 = vector.load %arg9[%c5_90, %c1_91, %c0_92] : memref<6x18x8xbf16, #tpu.memory_space<vmem>>, vector<1x16x8xbf16>
      tpu.vector_store %arg9[%c5_90, %c1_91, %c0_92], %94 {strides = array<i32>} : memref<6x18x8xbf16, #tpu.memory_space<vmem>>, vector<1x16x8xbf16>,
    } else {
    }
    %c3_i32_15 = arith.constant 3 : i32
    %17 = arith.cmpi slt, %arg1, %c3_i32_15 : i32
    %18 = arith.extui %17 : i1 to i32
    %c0_i32_16 = arith.constant 0 : i32
    %19 = arith.cmpi ne, %18, %c0_i32_16 : i32
    scf.if %19 {
      %c0_89 = arith.constant 0 : index
      %c0_90 = arith.constant 0 : index
      %c0_91 = arith.constant 0 : index
      %c0_92 = arith.constant 0 : index
      %94 = vector.load %arg4[%c0_89, %c0_90, %c0_91, %c0_92] : memref<1x1x16x8xf32, #tpu.memory_space<vmem>>, vector<1x1x16x8xf32>
      %95 = vector.shape_cast %94 : vector<1x1x16x8xf32> to vector<1x16x8xf32>
      %96 = arith.truncf %95 : vector<1x16x8xf32> to vector<1x16x8xbf16>
      %c5_93 = arith.constant 5 : index
      %c1_94 = arith.constant 1 : index
      %c0_95 = arith.constant 0 : index
      %97 = vector.load %arg9[%c5_93, %c1_94, %c0_95] : memref<6x18x8xbf16, #tpu.memory_space<vmem>>, vector<1x16x8xbf16>
      tpu.vector_store %arg9[%c5_93, %c1_94, %c0_95], %96 {strides = array<i32>} : memref<6x18x8xbf16, #tpu.memory_space<vmem>>, vector<1x16x8xbf16>,
    } else {
    }
    %cst_17 = arith.constant 0.000000e+00 : f32
    %20 = vector.broadcast %cst_17 : f32 to vector<64x32xf32>
    %c0_18 = arith.constant 0 : index
    %c0_19 = arith.constant 0 : index
    %c0_20 = arith.constant 0 : index
    %21 = vector.load %arg9[%c0_18, %c0_19, %c0_20] : memref<6x18x8xbf16, #tpu.memory_space<vmem>>, vector<4x16x8xbf16>
    %22 = vector.shape_cast %21 : vector<4x16x8xbf16> to vector<64x8xbf16>
    %c0_21 = arith.constant 0 : index
    %c0_22 = arith.constant 0 : index
    %c0_23 = arith.constant 0 : index
    %23 = vector.load %arg5[%c0_21, %c0_22, %c0_23] : memref<9x8x32xbf16, #tpu.memory_space<vmem>>, vector<1x8x32xbf16>
    %24 = vector.shape_cast %23 : vector<1x8x32xbf16> to vector<8x32xbf16>
    %cst_24 = arith.constant dense<0.000000e+00> : vector<64x32xf32>
    %25 = tpu.matmul %22, %24, %cst_24 {dimension_numbers = #tpu.dot_dimension_numbers<[1], [0], [0], [1], [0, 0, 1, 1], [], []>} : vector<64x8xbf16>, vector<8x32xbf16>, vector<64x32xf32> -> vector<64x32xf32>
    %26 = arith.addf %20, %25 : vector<64x32xf32>
    %c0_25 = arith.constant 0 : index
    %c1_26 = arith.constant 1 : index
    %c0_27 = arith.constant 0 : index
    %27 = vector.load %arg9[%c0_25, %c1_26, %c0_27] : memref<6x18x8xbf16, #tpu.memory_space<vmem>>, vector<4x16x8xbf16>
    %28 = vector.shape_cast %27 : vector<4x16x8xbf16> to vector<64x8xbf16>
    %c1_28 = arith.constant 1 : index
    %c0_29 = arith.constant 0 : index
    %c0_30 = arith.constant 0 : index
    %29 = vector.load %arg5[%c1_28, %c0_29, %c0_30] : memref<9x8x32xbf16, #tpu.memory_space<vmem>>, vector<1x8x32xbf16>
    %30 = vector.shape_cast %29 : vector<1x8x32xbf16> to vector<8x32xbf16>
    %cst_31 = arith.constant dense<0.000000e+00> : vector<64x32xf32>
    %31 = tpu.matmul %28, %30, %cst_31 {dimension_numbers = #tpu.dot_dimension_numbers<[1], [0], [0], [1], [0, 0, 1, 1], [], []>} : vector<64x8xbf16>, vector<8x32xbf16>, vector<64x32xf32> -> vector<64x32xf32>
    %32 = arith.addf %26, %31 : vector<64x32xf32>
    %c0_32 = arith.constant 0 : index
    %c2 = arith.constant 2 : index
    %c0_33 = arith.constant 0 : index
    %33 = vector.load %arg9[%c0_32, %c2, %c0_33] : memref<6x18x8xbf16, #tpu.memory_space<vmem>>, vector<4x16x8xbf16>
    %34 = vector.shape_cast %33 : vector<4x16x8xbf16> to vector<64x8xbf16>
    %c2_34 = arith.constant 2 : index
    %c0_35 = arith.constant 0 : index
    %c0_36 = arith.constant 0 : index
    %35 = vector.load %arg5[%c2_34, %c0_35, %c0_36] : memref<9x8x32xbf16, #tpu.memory_space<vmem>>, vector<1x8x32xbf16>
    %36 = vector.shape_cast %35 : vector<1x8x32xbf16> to vector<8x32xbf16>
    %cst_37 = arith.constant dense<0.000000e+00> : vector<64x32xf32>
    %37 = tpu.matmul %34, %36, %cst_37 {dimension_numbers = #tpu.dot_dimension_numbers<[1], [0], [0], [1], [0, 0, 1, 1], [], []>} : vector<64x8xbf16>, vector<8x32xbf16>, vector<64x32xf32> -> vector<64x32xf32>
    %38 = arith.addf %32, %37 : vector<64x32xf32>
    %c1_38 = arith.constant 1 : index
    %c0_39 = arith.constant 0 : index
    %c0_40 = arith.constant 0 : index
    %39 = vector.load %arg9[%c1_38, %c0_39, %c0_40] : memref<6x18x8xbf16, #tpu.memory_space<vmem>>, vector<4x16x8xbf16>
    %40 = vector.shape_cast %39 : vector<4x16x8xbf16> to vector<64x8xbf16>
    %c3 = arith.constant 3 : index
    %c0_41 = arith.constant 0 : index
    %c0_42 = arith.constant 0 : index
    %41 = vector.load %arg5[%c3, %c0_41, %c0_42] : memref<9x8x32xbf16, #tpu.memory_space<vmem>>, vector<1x8x32xbf16>
    %42 = vector.shape_cast %41 : vector<1x8x32xbf16> to vector<8x32xbf16>
    %cst_43 = arith.constant dense<0.000000e+00> : vector<64x32xf32>
    %43 = tpu.matmul %40, %42, %cst_43 {dimension_numbers = #tpu.dot_dimension_numbers<[1], [0], [0], [1], [0, 0, 1, 1], [], []>} : vector<64x8xbf16>, vector<8x32xbf16>, vector<64x32xf32> -> vector<64x32xf32>
    %44 = arith.addf %38, %43 : vector<64x32xf32>
    %c1_44 = arith.constant 1 : index
    %c1_45 = arith.constant 1 : index
    %c0_46 = arith.constant 0 : index
    %45 = vector.load %arg9[%c1_44, %c1_45, %c0_46] : memref<6x18x8xbf16, #tpu.memory_space<vmem>>, vector<4x16x8xbf16>
    %46 = vector.shape_cast %45 : vector<4x16x8xbf16> to vector<64x8xbf16>
    %c4 = arith.constant 4 : index
    %c0_47 = arith.constant 0 : index
    %c0_48 = arith.constant 0 : index
    %47 = vector.load %arg5[%c4, %c0_47, %c0_48] : memref<9x8x32xbf16, #tpu.memory_space<vmem>>, vector<1x8x32xbf16>
    %48 = vector.shape_cast %47 : vector<1x8x32xbf16> to vector<8x32xbf16>
    %cst_49 = arith.constant dense<0.000000e+00> : vector<64x32xf32>
    %49 = tpu.matmul %46, %48, %cst_49 {dimension_numbers = #tpu.dot_dimension_numbers<[1], [0], [0], [1], [0, 0, 1, 1], [], []>} : vector<64x8xbf16>, vector<8x32xbf16>, vector<64x32xf32> -> vector<64x32xf32>
    %50 = arith.addf %44, %49 : vector<64x32xf32>
    %c1_50 = arith.constant 1 : index
    %c2_51 = arith.constant 2 : index
    %c0_52 = arith.constant 0 : index
    %51 = vector.load %arg9[%c1_50, %c2_51, %c0_52] : memref<6x18x8xbf16, #tpu.memory_space<vmem>>, vector<4x16x8xbf16>
    %52 = vector.shape_cast %51 : vector<4x16x8xbf16> to vector<64x8xbf16>
    %c5 = arith.constant 5 : index
    %c0_53 = arith.constant 0 : index
    %c0_54 = arith.constant 0 : index
    %53 = vector.load %arg5[%c5, %c0_53, %c0_54] : memref<9x8x32xbf16, #tpu.memory_space<vmem>>, vector<1x8x32xbf16>
    %54 = vector.shape_cast %53 : vector<1x8x32xbf16> to vector<8x32xbf16>
    %cst_55 = arith.constant dense<0.000000e+00> : vector<64x32xf32>
    %55 = tpu.matmul %52, %54, %cst_55 {dimension_numbers = #tpu.dot_dimension_numbers<[1], [0], [0], [1], [0, 0, 1, 1], [], []>} : vector<64x8xbf16>, vector<8x32xbf16>, vector<64x32xf32> -> vector<64x32xf32>
    %56 = arith.addf %50, %55 : vector<64x32xf32>
    %c2_56 = arith.constant 2 : index
    %c0_57 = arith.constant 0 : index
    %c0_58 = arith.constant 0 : index
    %57 = vector.load %arg9[%c2_56, %c0_57, %c0_58] : memref<6x18x8xbf16, #tpu.memory_space<vmem>>, vector<4x16x8xbf16>
    %58 = vector.shape_cast %57 : vector<4x16x8xbf16> to vector<64x8xbf16>
    %c6 = arith.constant 6 : index
    %c0_59 = arith.constant 0 : index
    %c0_60 = arith.constant 0 : index
    %59 = vector.load %arg5[%c6, %c0_59, %c0_60] : memref<9x8x32xbf16, #tpu.memory_space<vmem>>, vector<1x8x32xbf16>
    %60 = vector.shape_cast %59 : vector<1x8x32xbf16> to vector<8x32xbf16>
    %cst_61 = arith.constant dense<0.000000e+00> : vector<64x32xf32>
    %61 = tpu.matmul %58, %60, %cst_61 {dimension_numbers = #tpu.dot_dimension_numbers<[1], [0], [0], [1], [0, 0, 1, 1], [], []>} : vector<64x8xbf16>, vector<8x32xbf16>, vector<64x32xf32> -> vector<64x32xf32>
    %62 = arith.addf %56, %61 : vector<64x32xf32>
    %c2_62 = arith.constant 2 : index
    %c1_63 = arith.constant 1 : index
    %c0_64 = arith.constant 0 : index
    %63 = vector.load %arg9[%c2_62, %c1_63, %c0_64] : memref<6x18x8xbf16, #tpu.memory_space<vmem>>, vector<4x16x8xbf16>
    %64 = vector.shape_cast %63 : vector<4x16x8xbf16> to vector<64x8xbf16>
    %c7 = arith.constant 7 : index
    %c0_65 = arith.constant 0 : index
    %c0_66 = arith.constant 0 : index
    %65 = vector.load %arg5[%c7, %c0_65, %c0_66] : memref<9x8x32xbf16, #tpu.memory_space<vmem>>, vector<1x8x32xbf16>
    %66 = vector.shape_cast %65 : vector<1x8x32xbf16> to vector<8x32xbf16>
    %cst_67 = arith.constant dense<0.000000e+00> : vector<64x32xf32>
    %67 = tpu.matmul %64, %66, %cst_67 {dimension_numbers = #tpu.dot_dimension_numbers<[1], [0], [0], [1], [0, 0, 1, 1], [], []>} : vector<64x8xbf16>, vector<8x32xbf16>, vector<64x32xf32> -> vector<64x32xf32>
    %68 = arith.addf %62, %67 : vector<64x32xf32>
    %c2_68 = arith.constant 2 : index
    %c2_69 = arith.constant 2 : index
    %c0_70 = arith.constant 0 : index
    %69 = vector.load %arg9[%c2_68, %c2_69, %c0_70] : memref<6x18x8xbf16, #tpu.memory_space<vmem>>, vector<4x16x8xbf16>
    %70 = vector.shape_cast %69 : vector<4x16x8xbf16> to vector<64x8xbf16>
    %c8 = arith.constant 8 : index
    %c0_71 = arith.constant 0 : index
    %c0_72 = arith.constant 0 : index
    %71 = vector.load %arg5[%c8, %c0_71, %c0_72] : memref<9x8x32xbf16, #tpu.memory_space<vmem>>, vector<1x8x32xbf16>
    %72 = vector.shape_cast %71 : vector<1x8x32xbf16> to vector<8x32xbf16>
    %cst_73 = arith.constant dense<0.000000e+00> : vector<64x32xf32>
    %73 = tpu.matmul %70, %72, %cst_73 {dimension_numbers = #tpu.dot_dimension_numbers<[1], [0], [0], [1], [0, 0, 1, 1], [], []>} : vector<64x8xbf16>, vector<8x32xbf16>, vector<64x32xf32> -> vector<64x32xf32>
    %74 = arith.addf %68, %73 : vector<64x32xf32>
    %c0_74 = arith.constant 0 : index
    %c0_75 = arith.constant 0 : index
    %75 = vector.load %arg6[%c0_74, %c0_75] : memref<1x32xf32, #tpu.memory_space<vmem>>, vector<1x32xf32>
    %76 = vector.broadcast %75 : vector<1x32xf32> to vector<64x32xf32>
    %77 = arith.addf %74, %76 : vector<64x32xf32>
    %cst_76 = arith.constant 0.000000e+00 : f32
    %78 = vector.broadcast %cst_76 : f32 to vector<64x32xf32>
    %79 = arith.cmpf oge, %77, %78 : vector<64x32xf32>
    %c0_77 = arith.constant 0 : index
    %c0_78 = arith.constant 0 : index
    %80 = vector.load %arg7[%c0_77, %c0_78] : memref<1x32xf32, #tpu.memory_space<vmem>>, vector<1x32xf32>
    %81 = vector.broadcast %80 : vector<1x32xf32> to vector<64x32xf32>
    %82 = arith.mulf %81, %77 : vector<64x32xf32>
    %83 = arith.select %79, %77, %82 : vector<64x32xi1>, vector<64x32xf32>
    %84 = vector.extract_strided_slice %83 {offsets = [0, 0], sizes = [64, 16], strides = [1, 1]} : vector<64x32xf32> to vector<64x16xf32>
    %85 = vector.shape_cast %84 : vector<64x16xf32> to vector<4x16x16xf32>
    %c0_79 = arith.constant 0 : index
    %c0_80 = arith.constant 0 : index
    %c0_81 = arith.constant 0 : index
    %c0_82 = arith.constant 0 : index
    %c0_83 = arith.constant 0 : index
    %86 = vector.load %arg8[%c0_79, %c0_80, %c0_81, %c0_82, %c0_83] : memref<1x4x2x16x16xf32, #tpu.memory_space<vmem>>, vector<1x4x1x16x16xf32>
    %87 = vector.shape_cast %86 : vector<1x4x1x16x16xf32> to vector<4x16x16xf32>
    %88 = vector.shape_cast %85 : vector<4x16x16xf32> to vector<1x4x1x16x16xf32>
    tpu.vector_store %arg8[%c0_79, %c0_80, %c0_81, %c0_82, %c0_83], %88 {strides = array<i32>} : memref<1x4x2x16x16xf32, #tpu.memory_space<vmem>>, vector<1x4x1x16x16xf32>,
    %89 = vector.extract_strided_slice %83 {offsets = [0, 16], sizes = [64, 16], strides = [1, 1]} : vector<64x32xf32> to vector<64x16xf32>
    %90 = vector.shape_cast %89 : vector<64x16xf32> to vector<4x16x16xf32>
    %c0_84 = arith.constant 0 : index
    %c0_85 = arith.constant 0 : index
    %c1_86 = arith.constant 1 : index
    %c0_87 = arith.constant 0 : index
    %c0_88 = arith.constant 0 : index
    %91 = vector.load %arg8[%c0_84, %c0_85, %c1_86, %c0_87, %c0_88] : memref<1x4x2x16x16xf32, #tpu.memory_space<vmem>>, vector<1x4x1x16x16xf32>
    %92 = vector.shape_cast %91 : vector<1x4x1x16x16xf32> to vector<4x16x16xf32>
    %93 = vector.shape_cast %90 : vector<4x16x16xf32> to vector<1x4x1x16x16xf32>
    tpu.vector_store %arg8[%c0_84, %c0_85, %c1_86, %c0_87, %c0_88], %93 {strides = array<i32>} : memref<1x4x2x16x16xf32, #tpu.memory_space<vmem>>, vector<1x4x1x16x16xf32>,
    return
  }
  func.func @transform_0(%arg0: i32, %arg1: i32) -> (i32, i32, i32, i32) {
    %c4_i32 = arith.constant 4 : i32
    %0 = arith.muli %arg1, %c4_i32 : i32
    %c1_i32 = arith.constant 1 : i32
    %1 = arith.subi %0, %c1_i32 : i32
    %c0_i32 = arith.constant 0 : i32
    %2 = arith.maxsi %1, %c0_i32 : i32
    %c0_i32_0 = arith.constant 0 : i32
    %c0_i32_1 = arith.constant 0 : i32
    %c0_i32_2 = arith.constant 0 : i32
    return %arg0, %2, %c0_i32_0, %c0_i32_1 : i32, i32, i32, i32
  }
  func.func @transform_1(%arg0: i32, %arg1: i32) -> (i32, i32, i32, i32) {
    %c0_i32 = arith.constant 0 : i32
    %c0_i32_0 = arith.constant 0 : i32
    %c0_i32_1 = arith.constant 0 : i32
    return %arg0, %arg1, %c0_i32, %c0_i32_0 : i32, i32, i32, i32
  }
  func.func @transform_2(%arg0: i32, %arg1: i32) -> (i32, i32, i32, i32) {
    %c1_i32 = arith.constant 1 : i32
    %0 = arith.addi %arg1, %c1_i32 : i32
    %c4_i32 = arith.constant 4 : i32
    %1 = arith.muli %0, %c4_i32 : i32
    %c15_i32 = arith.constant 15 : i32
    %2 = arith.minsi %1, %c15_i32 : i32
    %c0_i32 = arith.constant 0 : i32
    %c0_i32_0 = arith.constant 0 : i32
    %c0_i32_1 = arith.constant 0 : i32
    return %arg0, %2, %c0_i32, %c0_i32_0 : i32, i32, i32, i32
  }
  func.func @transform_3(%arg0: i32, %arg1: i32) -> (i32, i32, i32) {
    %c0_i32 = arith.constant 0 : i32
    %c0_i32_0 = arith.constant 0 : i32
    %c0_i32_1 = arith.constant 0 : i32
    %c0_i32_2 = arith.constant 0 : i32
    return %c0_i32, %c0_i32_0, %c0_i32_1 : i32, i32, i32
  }
  func.func @transform_4(%arg0: i32, %arg1: i32) -> (i32, i32) {
    %c0_i32 = arith.constant 0 : i32
    %c0_i32_0 = arith.constant 0 : i32
    %c0_i32_1 = arith.constant 0 : i32
    return %c0_i32, %c0_i32_0 : i32, i32
  }
  func.func @transform_5(%arg0: i32, %arg1: i32) -> (i32, i32) {
    %c0_i32 = arith.constant 0 : i32
    %c0_i32_0 = arith.constant 0 : i32
    %c0_i32_1 = arith.constant 0 : i32
    return %c0_i32, %c0_i32_0 : i32, i32
  }
  func.func @transform_6(%arg0: i32, %arg1: i32) -> (i32, i32, i32, i32, i32) {
    %c4_i32 = arith.constant 4 : i32
    %0 = arith.muli %arg0, %c4_i32 : i32
    %1 = arith.addi %0, %arg1 : i32
    %c0_i32 = arith.constant 0 : i32
    %c0_i32_0 = arith.constant 0 : i32
    %c0_i32_1 = arith.constant 0 : i32
    %c0_i32_2 = arith.constant 0 : i32
    %c0_i32_3 = arith.constant 0 : i32
    return %1, %c0_i32, %c0_i32_0, %c0_i32_1, %c0_i32_2 : i32, i32, i32, i32, i32
  }
}

</mosaic_0001>

<llo_original>
// kernel: tpu_custom_call.1
$region0: #{tpu_custom_call.1}
  #allocation0 [shape = 'u32[]', space=smem, size = 0x4, offset = 0x4, fixed_abs, tag = 'smem constant byte address 0x4 - core index']
  #allocation1 [shape = 'u32[144,128]{1,0:T(1,128)}', space=vmem, size = 0x12000, scoped, tag = 'internal scratch']
  #allocation2 [shape = 'bf16[6,18,8]{2,1,0:T(8,128)(2,1)}', space=vmem, size = 0x9000, scoped, tag = 'scratch operand']
  %s0 = inlined_call_operand.hbm [shape: f32[2,16,16,8], index: 0, kind: input, shape index: {}]
  %s1 = inlined_call_operand.hbm [shape: f32[2,16,16,8], index: 1, kind: input, shape index: {}]
  %s2 = inlined_call_operand.hbm [shape: f32[2,16,16,8], index: 2, kind: input, shape index: {}]
  %s3 = inlined_call_operand.hbm [shape: bf16[9,8,32], index: 3, kind: input, shape index: {}]
  %s4 = inlined_call_operand.hbm [shape: f32[1,32], index: 4, kind: input, shape index: {}]
  %s5 = inlined_call_operand.hbm [shape: f32[1,32], index: 5, kind: input, shape index: {}]
  %s6 = inlined_call_operand.hbm [shape: f32[8,4,2,16,16], index: 6, kind: output, shape index: {}]
  %s7 = sld [smem:[#allocation0]]
  $region97: #{tpu_custom_call.1} parent=0
    _
  %s9 = ssub.s32 1, %s7
  %s10 = scalar_select 0, %s9, %s7
  $region1: #{tpu_custom_call.1} parent=0
    #allocation3 [shape = 'u8[16384]{0}', space=vmem, size = 0x4000, scoped, tag = 'input window, operand 0']
    #allocation4 [shape = 's32[2]{0}', space=sflag, size = 0x8, scoped, tag = 'scoped memory for tpu_custom_call.1']
    #allocation5 [shape = 's32[2]{0}', space=sflag, size = 0x8, scoped, tag = 'scoped memory for tpu_custom_call.1']
    #allocation6 [shape = 'u8[65536]{0}', space=vmem, size = 0x10000, scoped, tag = 'input window, operand 1']
    #allocation7 [shape = 's32[2]{0}', space=sflag, size = 0x8, scoped, tag = 'scoped memory for tpu_custom_call.1']
    #allocation8 [shape = 'u8[16384]{0}', space=vmem, size = 0x4000, scoped, tag = 'input window, operand 2']
    #allocation9 [shape = 'u8[18432]{0}', space=vmem, size = 0x4800, scoped, tag = 'input window, operand 3, single buffered']
    #allocation10 [shape = 's32[1]{0}', space=sflag, size = 0x4, scoped, tag = 'scoped memory for tpu_custom_call.1']
    #allocation11 [shape = 'u8[512]{0}', space=vmem, size = 0x400, scoped, tag = 'input window, operand 4, single buffered']
    #allocation12 [shape = 'u8[512]{0}', space=vmem, size = 0x400, scoped, tag = 'input window, operand 5, single buffered']
    #allocation13 [shape = 's32[1]{0}', space=sflag, size = 0x4, scoped, tag = 'scoped memory for tpu_custom_call.1']
    #allocation14 [shape = 'u8[131072]{0}', space=vmem, size = 0x20000, scoped, tag = 'output window, operand 0']
    %11 = vsyncpa [#allocation4], 0
    %s12 = scalar_lea.sflag [#allocation4], 1
    %13 = vsyncpa %s12, 0
    %14 = vsyncpa [#allocation7], 0
    %s15 = scalar_lea.sflag [#allocation7], 1
    %16 = vsyncpa %s15, 0
    %17 = vsyncpa [#allocation10], 0
    %18 = vsyncpa [#allocation13], 0
    %19 = vsyncpa [#allocation5], 0
    %s20 = scalar_lea.sflag [#allocation5], 1
    %21 = vsyncpa %s20, 0
    loop: start=0, step=1, limit=10
    $region2: #{tpu_custom_call.1} parent=1 // loop_pre_header
      _
    $region3: #{tpu_custom_call.1} parent=1 // loop_header
      %s23 = sphi 0, %s27
      %p24 = scmp.ge.s32.totalorder %s23, 10
      %s30 = sphi 0, %s42
      %s31 = sphi 0, %s38
      %s32 = sphi 0, %s30
      %s33 = sphi 0, %s31
      %s34 = sphi 0, %s32
      %s35 = sphi 0, %s33
      %s55 = sphi 0, %s57
      %s58 = sphi 0, %s55
      %s59 = sphi 0, %s58
      %s75 = sphi 0, %s59
      %s83 = sphi 0, %s85
      %s86 = sphi 0, %s83
      %s87 = sphi 0, %s86
      %s103 = sphi 0, %s87
      %s119 = sphi 0, %s121
      %s122 = sphi 0, %s119
      %s123 = sphi 0, %s122
      %s139 = sphi 0, %s123
      %s143 = sphi 0, %s143
      %s145 = sphi 0, %s143
      %s146 = sphi 0, %s145
      %s160 = sphi 0, %s146
      %s164 = sphi 0, %s164
      %s166 = sphi 0, %s164
      %s167 = sphi 0, %s166
      %s181 = sphi 0, %s167
      %s185 = sphi 0, %s185
      %s187 = sphi 0, %s185
      %s188 = sphi 0, %s187
      %s202 = sphi 0, %s188
      %s212 = sphi 0, %s214
      %s215 = sphi 0, %s212
      %s216 = sphi 0, %s215
      %s232 = sphi 0, %s216
    $region4: #{tpu_custom_call.1} parent=1 // loop_header_branch
      %26 = sbr.rel (%p24) target = $region8
    $region5: #{tpu_custom_call.1} parent=1 // loop_body
      %s28 = ssub.s32 %s23, 1
      %s29 = ssub.s32 %s23, 2
      %s36 = sadd.s32 1, %s31
      %p37 = scmp.ge.s32.totalorder %s36, 4
      %s38 = scalar_select %p37, 0, %s36
      %s39 = sadd.s32 1, %s30
      %s40 = scalar_select %p37, %s39, %s30
      %p41 = scmp.ge.s32.totalorder %s40, 2
      %s42 = scalar_select %p41, 0, %s40
      %s43 = smul.u32 %s31, 4
      %s44 = ssub.s32 %s43, 1
      %p45 = scmp.gt.s32.totalorder %s44, 0
      %s46 = scalar_select %p45, %s44, 0
      %s47 = smul.u32 %s38, 4
      %s48 = ssub.s32 %s47, 1
      %p49 = scmp.gt.s32.totalorder %s48, 0
      %s50 = scalar_select %p49, %s48, 0
      %s51 = ssub.s32 %s30, %s42
      %s52 = ssub.s32 %s46, %s50
      %s53 = sor.u32 %s51, %s52
      %p54 = scmp.eq.s32.totalorder %s53, 0
      %s56 = sadd.s32 %s55, 1
      %s57 = scalar_select %p54, %s55, %s56
      %p60 = pneg %p54
      %p61 = scmp.eq.s32.totalorder %s23, 7
      %p62 = por %p60, %p61
      %p63 = scmp.ne.s32.totalorder %s55, %s58
      %p64 = scmp.eq.s32.totalorder %s23, 0
      %p65 = por %p63, %p64
      %p66 = scmp.ne.s32.totalorder %s55, %s58
      %p67 = scmp.eq.s32.totalorder %s28, 7
      %p68 = por %p66, %p67
      %p69 = scmp.ne.s32.totalorder %s58, %s59
      %p70 = scmp.eq.s32.totalorder %s28, 0
      %p71 = por %p69, %p70
      %p72 = scmp.ne.s32.totalorder %s58, %s59
      %p73 = scmp.eq.s32.totalorder %s29, 7
      %p74 = por %p72, %p73
      %p76 = scmp.ne.s32.totalorder %s59, %s75
      %p77 = scmp.eq.s32.totalorder %s29, 0
      %p78 = por %p76, %p77
      %s79 = ssub.s32 %s30, %s42
      %s80 = ssub.s32 %s31, %s38
      %s81 = sor.u32 %s79, %s80
      %p82 = scmp.eq.s32.totalorder %s81, 0
      %s84 = sadd.s32 %s83, 1
      %s85 = scalar_select %p82, %s83, %s84
      %p88 = pneg %p82
      %p89 = scmp.eq.s32.totalorder %s23, 7
      %p90 = por %p88, %p89
      %p91 = scmp.ne.s32.totalorder %s83, %s86
      %p92 = scmp.eq.s32.totalorder %s23, 0
      %p93 = por %p91, %p92
      %p94 = scmp.ne.s32.totalorder %s83, %s86
      %p95 = scmp.eq.s32.totalorder %s28, 7
      %p96 = por %p94, %p95
      %p97 = scmp.ne.s32.totalorder %s86, %s87
      %p98 = scmp.eq.s32.totalorder %s28, 0
      %p99 = por %p97, %p98
      %p100 = scmp.ne.s32.totalorder %s86, %s87
      %p101 = scmp.eq.s32.totalorder %s29, 7
      %p102 = por %p100, %p101
      %p104 = scmp.ne.s32.totalorder %s87, %s103
      %p105 = scmp.eq.s32.totalorder %s29, 0
      %p106 = por %p104, %p105
      %s107 = sadd.s32 %s31, 1
      %s108 = smul.u32 %s107, 4
      %p109 = scmp.lt.s32.totalorder %s108, 15
      %s110 = scalar_select %p109, %s108, 15
      %s111 = sadd.s32 %s38, 1
      %s112 = smul.u32 %s111, 4
      %p113 = scmp.lt.s32.totalorder %s112, 15
      %s114 = scalar_select %p113, %s112, 15
      %s115 = ssub.s32 %s30, %s42
      %s116 = ssub.s32 %s110, %s114
      %s117 = sor.u32 %s115, %s116
      %p118 = scmp.eq.s32.totalorder %s117, 0
      %s120 = sadd.s32 %s119, 1
      %s121 = scalar_select %p118, %s119, %s120
      %p124 = pneg %p118
      %p125 = scmp.eq.s32.totalorder %s23, 7
      %p126 = por %p124, %p125
      %p127 = scmp.ne.s32.totalorder %s119, %s122
      %p128 = scmp.eq.s32.totalorder %s23, 0
      %p129 = por %p127, %p128
      %p130 = scmp.ne.s32.totalorder %s119, %s122
      %p131 = scmp.eq.s32.totalorder %s28, 7
      %p132 = por %p130, %p131
      %p133 = scmp.ne.s32.totalorder %s122, %s123
      %p134 = scmp.eq.s32.totalorder %s28, 0
      %p135 = por %p133, %p134
      %p136 = scmp.ne.s32.totalorder %s122, %s123
      %p137 = scmp.eq.s32.totalorder %s29, 7
      %p138 = por %p136, %p137
      %p140 = scmp.ne.s32.totalorder %s123, %s139
      %p141 = scmp.eq.s32.totalorder %s29, 0
      %p142 = por %p140, %p141
      %s144 = sadd.s32 %s143, 1
      %p147 = scmp.eq.s32.totalorder %s23, 7
      %p148 = scmp.ne.s32.totalorder %s143, %s145
      %p149 = scmp.eq.s32.totalorder %s23, 0
      %p150 = por %p148, %p149
      %p151 = scmp.ne.s32.totalorder %s143, %s145
      %p152 = scmp.eq.s32.totalorder %s28, 7
      %p153 = por %p151, %p152
      %p154 = scmp.ne.s32.totalorder %s145, %s146
      %p155 = scmp.eq.s32.totalorder %s28, 0
      %p156 = por %p154, %p155
      %p157 = scmp.ne.s32.totalorder %s145, %s146
      %p158 = scmp.eq.s32.totalorder %s29, 7
      %p159 = por %p157, %p158
      %p161 = scmp.ne.s32.totalorder %s146, %s160
      %p162 = scmp.eq.s32.totalorder %s29, 0
      %p163 = por %p161, %p162
      %s165 = sadd.s32 %s164, 1
      %p168 = scmp.eq.s32.totalorder %s23, 7
      %p169 = scmp.ne.s32.totalorder %s164, %s166
      %p170 = scmp.eq.s32.totalorder %s23, 0
      %p171 = por %p169, %p170
      %p172 = scmp.ne.s32.totalorder %s164, %s166
      %p173 = scmp.eq.s32.totalorder %s28, 7
      %p174 = por %p172, %p173
      %p175 = scmp.ne.s32.totalorder %s166, %s167
      %p176 = scmp.eq.s32.totalorder %s28, 0
      %p177 = por %p175, %p176
      %p178 = scmp.ne.s32.totalorder %s166, %s167
      %p179 = scmp.eq.s32.totalorder %s29, 7
      %p180 = por %p178, %p179
      %p182 = scmp.ne.s32.totalorder %s167, %s181
      %p183 = scmp.eq.s32.totalorder %s29, 0
      %p184 = por %p182, %p183
      %s186 = sadd.s32 %s185, 1
      %p189 = scmp.eq.s32.totalorder %s23, 7
      %p190 = scmp.ne.s32.totalorder %s185, %s187
      %p191 = scmp.eq.s32.totalorder %s23, 0
      %p192 = por %p190, %p191
      %p193 = scmp.ne.s32.totalorder %s185, %s187
      %p194 = scmp.eq.s32.totalorder %s28, 7
      %p195 = por %p193, %p194
      %p196 = scmp.ne.s32.totalorder %s187, %s188
      %p197 = scmp.eq.s32.totalorder %s28, 0
      %p198 = por %p196, %p197
      %p199 = scmp.ne.s32.totalorder %s187, %s188
      %p200 = scmp.eq.s32.totalorder %s29, 7
      %p201 = por %p199, %p200
      %p203 = scmp.ne.s32.totalorder %s188, %s202
      %p204 = scmp.eq.s32.totalorder %s29, 0
      %p205 = por %p203, %p204
      %s206 = smul.u32 %s30, 4
      %s207 = sadd.s32 %s206, %s31
      %s208 = smul.u32 %s42, 4
      %s209 = sadd.s32 %s208, %s38
      %s210 = ssub.s32 %s207, %s209
      %p211 = scmp.eq.s32.totalorder %s210, 0
      %s213 = sadd.s32 %s212, 1
      %s214 = scalar_select %p211, %s212, %s213
      %p217 = pneg %p211
      %p218 = scmp.eq.s32.totalorder %s23, 7
      %p219 = por %p217, %p218
      %p220 = scmp.ne.s32.totalorder %s212, %s215
      %p221 = scmp.eq.s32.totalorder %s23, 0
      %p222 = por %p220, %p221
      %p223 = scmp.ne.s32.totalorder %s212, %s215
      %p224 = scmp.eq.s32.totalorder %s28, 7
      %p225 = por %p223, %p224
      %p226 = scmp.ne.s32.totalorder %s215, %s216
      %p227 = scmp.eq.s32.totalorder %s28, 0
      %p228 = por %p226, %p227
      %p229 = scmp.ne.s32.totalorder %s215, %s216
      %p230 = scmp.eq.s32.totalorder %s29, 7
      %p231 = por %p229, %p230
      %p233 = scmp.ne.s32.totalorder %s216, %s232
      %p234 = scmp.eq.s32.totalorder %s29, 0
      %p235 = por %p233, %p234
      %p236 = scmp.le.s32.totalorder 1, %s23
      %p237 = scmp.lt.s32.totalorder %s23, 9
      %p238 = pnand %p236, %p237
      %p239 = pneg %p238
      // Predicated region
      $region9: #{tpu_custom_call.1} parent=5 // pred_check
        _
      $region10: #{tpu_custom_call.1} parent=5 // pred_check_branch
        %241 = sbr.rel (%p238) target = $region12
      $region11: #{tpu_custom_call.1} parent=5 // pred_region
        %s242 = ssub.s32 %s23, 1
        // Predicated region
        $region13: #{tpu_custom_call.1} parent=11 // pred_check
          %p243 = pneg %p156
        $region14: #{tpu_custom_call.1} parent=11 // pred_check_branch
          %245 = sbr.rel (%p243) target = $region16
        $region15: #{tpu_custom_call.1} parent=11 // pred_region
          %s247 = ssub.s32 576, 576
          %248 = vsyncadd [#allocation10], %s247
          %s249 = sshll.u32 [#allocation9], 4
          %s250 = int_to_ptr.vmem [resolvable:$true] %s249
          %255 = dma.hbm_to_vmem [thread:$0]  %s3, 576, %s250, [#allocation10], 64, 64, 4
        $region16: #{tpu_custom_call.1} parent=11 // pred_fallthru
          _
        // Predicated region
        $region17: #{tpu_custom_call.1} parent=11 // pred_check
          %p256 = pneg %p177
        $region18: #{tpu_custom_call.1} parent=11 // pred_check_branch
          %258 = sbr.rel (%p256) target = $region20
        $region19: #{tpu_custom_call.1} parent=11 // pred_region
          %s260 = ssub.s32 16, 16
          %261 = vsyncadd [#allocation10], %s260
          %s263 = sshll.u32 [#allocation11], 4
          %s264 = int_to_ptr.vmem [resolvable:$true] %s263
          %266 = dma.hbm_to_vmem [thread:$0]  %s4, 16, %s264, [#allocation10]
        $region20: #{tpu_custom_call.1} parent=11 // pred_fallthru
          _
        // Predicated region
        $region21: #{tpu_custom_call.1} parent=11 // pred_check
          %p267 = pneg %p198
        $region22: #{tpu_custom_call.1} parent=11 // pred_check_branch
          %269 = sbr.rel (%p267) target = $region24
        $region23: #{tpu_custom_call.1} parent=11 // pred_region
          %s271 = ssub.s32 16, 16
          %272 = vsyncadd [#allocation13], %s271
          %s274 = sshll.u32 [#allocation12], 4
          %s275 = int_to_ptr.vmem [resolvable:$true] %s274
          %277 = dma.hbm_to_vmem [thread:$0]  %s5, 16, %s275, [#allocation13]
        $region24: #{tpu_custom_call.1} parent=11 // pred_fallthru
          _
      $region12: #{tpu_custom_call.1} parent=5 // pred_fallthru
        _
      %p278 = scmp.lt.s32.totalorder %s23, 8
      // Predicated region
      $region25: #{tpu_custom_call.1} parent=5 // pred_check
        %p279 = pneg %p278
      $region26: #{tpu_custom_call.1} parent=5 // pred_check_branch
        %281 = sbr.rel (%p279) target = $region28
      $region27: #{tpu_custom_call.1} parent=5 // pred_region
        // Predicated region
        $region29: #{tpu_custom_call.1} parent=27 // pred_check
          %p282 = pneg %p65
        $region30: #{tpu_custom_call.1} parent=27 // pred_check_branch
          %284 = sbr.rel (%p282) target = $region32
        $region31: #{tpu_custom_call.1} parent=27 // pred_region
          %s285 = sand.u32 %s55, 1
          %s286 = scalar_lea.sflag [#allocation4], %s285
          %s287 = sand.u32 %s55, 1
          %s288 = smul.addr %s287, 16
          %s289 = scalar_lea.vmem [#allocation3], %s288
          %s290 = smul.u32 %s31, 4
          %s291 = ssub.s32 %s290, 1
          %p292 = scmp.gt.s32.totalorder %s291, 0
          %s293 = scalar_select %p292, %s291, 0
          %s295 = ssub.s32 256, 256
          %296 = vsyncadd %s286, %s295
          %s297 = smul.addr %s293, 2
          %s298 = smul.addr %s30, 32
          %s299 = sadd.s32 %s297, %s298
          %s300 = smul.addr %s299, 128
          %s301 = scalar_lea.hbm %s0, %s300
          %s302 = sshll.u32 %s289, 4
          %s303 = int_to_ptr.vmem [resolvable:$true] %s302
          %308 = dma.hbm_to_vmem [thread:$0]  %s301, 256, %s303, %s286, 128, 128, 8
        $region32: #{tpu_custom_call.1} parent=27 // pred_fallthru
          _
        // Predicated region
        $region33: #{tpu_custom_call.1} parent=27 // pred_check
          %p309 = pneg %p93
        $region34: #{tpu_custom_call.1} parent=27 // pred_check_branch
          %311 = sbr.rel (%p309) target = $region36
        $region35: #{tpu_custom_call.1} parent=27 // pred_region
          %s312 = sand.u32 %s23, 1
          %s313 = scalar_lea.sflag [#allocation7], %s312
          %s314 = sand.u32 %s83, 1
          %s315 = smul.addr %s314, 64
          %s316 = scalar_lea.vmem [#allocation6], %s315
          %s317 = smul.u32 4, %s31
          %s319 = ssub.s32 1024, 1024
          %320 = vsyncadd %s313, %s319
          %s321 = smul.addr %s317, 2
          %s322 = smul.addr %s30, 32
          %s323 = sadd.s32 %s321, %s322
          %s324 = smul.addr %s323, 128
          %s325 = scalar_lea.hbm %s1, %s324
          %s326 = sshll.u32 %s316, 4
          %s327 = int_to_ptr.vmem [resolvable:$true] %s326
          %332 = dma.hbm_to_vmem [thread:$0]  %s325, 1024, %s327, %s313, 128, 128, 8
        $region36: #{tpu_custom_call.1} parent=27 // pred_fallthru
          _
        // Predicated region
        $region37: #{tpu_custom_call.1} parent=27 // pred_check
          %p333 = pneg %p129
        $region38: #{tpu_custom_call.1} parent=27 // pred_check_branch
          %335 = sbr.rel (%p333) target = $region40
        $region39: #{tpu_custom_call.1} parent=27 // pred_region
          %s336 = sand.u32 %s23, 1
          %s337 = scalar_lea.sflag [#allocation7], %s336
          %s338 = sand.u32 %s119, 1
          %s339 = smul.addr %s338, 16
          %s340 = scalar_lea.vmem [#allocation8], %s339
          %s341 = sadd.s32 %s31, 1
          %s342 = smul.u32 %s341, 4
          %p343 = scmp.lt.s32.totalorder %s342, 15
          %s344 = scalar_select %p343, %s342, 15
          %s346 = ssub.s32 256, 256
          %347 = vsyncadd %s337, %s346
          %s348 = smul.addr %s344, 2
          %s349 = smul.addr %s30, 32
          %s350 = sadd.s32 %s348, %s349
          %s351 = smul.addr %s350, 128
          %s352 = scalar_lea.hbm %s2, %s351
          %s353 = sshll.u32 %s340, 4
          %s354 = int_to_ptr.vmem [resolvable:$true] %s353
          %359 = dma.hbm_to_vmem [thread:$0]  %s352, 256, %s354, %s337, 128, 128, 8
        $region40: #{tpu_custom_call.1} parent=27 // pred_fallthru
          _
      $region28: #{tpu_custom_call.1} parent=5 // pred_fallthru
        _
      %p360 = scmp.le.s32.totalorder 1, %s23
      %p361 = scmp.lt.s32.totalorder %s23, 9
      %p362 = pnand %p360, %p361
      %p363 = pneg %p362
      // Predicated region
      $region41: #{tpu_custom_call.1} parent=5 // pred_check
        _
      $region42: #{tpu_custom_call.1} parent=5 // pred_check_branch
        %365 = sbr.rel (%p362) target = $region44
      $region43: #{tpu_custom_call.1} parent=5 // pred_region
        %s366 = ssub.s32 %s23, 1
        %s367 = sand.u32 %s58, 1
        %s368 = scalar_lea.sflag [#allocation4], %s367
        %s369 = sand.u32 %s58, 1
        %s370 = smul.addr %s369, 16
        %s371 = scalar_lea.vmem [#allocation3], %s370
        // Predicated region
        $region45: #{tpu_custom_call.1} parent=43 // pred_check
          %p372 = pneg %p71
        $region46: #{tpu_custom_call.1} parent=43 // pred_check_branch
          %374 = sbr.rel (%p372) target = $region48
        $region47: #{tpu_custom_call.1} parent=43 // pred_region
          %375 = dma.done %s368, 256
        $region48: #{tpu_custom_call.1} parent=43 // pred_fallthru
          _
        %s376 = sand.u32 %s28, 1
        %s377 = scalar_lea.sflag [#allocation7], %s376
        %s378 = sand.u32 %s86, 1
        %s379 = smul.addr %s378, 64
        %s380 = scalar_lea.vmem [#allocation6], %s379
        // Predicated region
        $region49: #{tpu_custom_call.1} parent=43 // pred_check
          %p381 = pneg %p99
        $region50: #{tpu_custom_call.1} parent=43 // pred_check_branch
          %383 = sbr.rel (%p381) target = $region52
        $region51: #{tpu_custom_call.1} parent=43 // pred_region
          %384 = dma.done %s377, 1024
        $region52: #{tpu_custom_call.1} parent=43 // pred_fallthru
          _
        %s385 = sand.u32 %s28, 1
        %s386 = scalar_lea.sflag [#allocation7], %s385
        %s387 = sand.u32 %s122, 1
        %s388 = smul.addr %s387, 16
        %s389 = scalar_lea.vmem [#allocation8], %s388
        // Predicated region
        $region53: #{tpu_custom_call.1} parent=43 // pred_check
          %p390 = pneg %p135
        $region54: #{tpu_custom_call.1} parent=43 // pred_check_branch
          %392 = sbr.rel (%p390) target = $region56
        $region55: #{tpu_custom_call.1} parent=43 // pred_region
          %393 = dma.done %s386, 256
        $region56: #{tpu_custom_call.1} parent=43 // pred_fallthru
          _
        // Predicated region
        $region57: #{tpu_custom_call.1} parent=43 // pred_check
          %p394 = pneg %p156
        $region58: #{tpu_custom_call.1} parent=43 // pred_check_branch
          %396 = sbr.rel (%p394) target = $region60
        $region59: #{tpu_custom_call.1} parent=43 // pred_region
          %397 = dma.done [#allocation10], 576
        $region60: #{tpu_custom_call.1} parent=43 // pred_fallthru
          _
        // Predicated region
        $region61: #{tpu_custom_call.1} parent=43 // pred_check
          %p398 = pneg %p177
        $region62: #{tpu_custom_call.1} parent=43 // pred_check_branch
          %400 = sbr.rel (%p398) target = $region64
        $region63: #{tpu_custom_call.1} parent=43 // pred_region
          %401 = dma.done [#allocation10], 16
        $region64: #{tpu_custom_call.1} parent=43 // pred_fallthru
          _
        // Predicated region
        $region65: #{tpu_custom_call.1} parent=43 // pred_check
          %p402 = pneg %p198
        $region66: #{tpu_custom_call.1} parent=43 // pred_check_branch
          %404 = sbr.rel (%p402) target = $region68
        $region67: #{tpu_custom_call.1} parent=43 // pred_region
          %405 = dma.done [#allocation13], 16
        $region68: #{tpu_custom_call.1} parent=43 // pred_fallthru
          _
        %s406 = sand.u32 %s58, 1
        %s407 = scalar_lea.sflag [#allocation4], %s406
        %s408 = sand.u32 %s58, 1
        %s409 = smul.addr %s408, 16
        %s410 = scalar_lea.vmem [#allocation3], %s409
        %p411 = pneg %p71
        %p412 = pneg %p68
        %s413 = sand.u32 %s28, 1
        %s414 = scalar_lea.sflag [#allocation7], %s413
        %s415 = sand.u32 %s86, 1
        %s416 = smul.addr %s415, 64
        %s417 = scalar_lea.vmem [#allocation6], %s416
        %p418 = pneg %p99
        %p419 = pneg %p96
        %s420 = sand.u32 %s28, 1
        %s421 = scalar_lea.sflag [#allocation7], %s420
        %s422 = sand.u32 %s122, 1
        %s423 = smul.addr %s422, 16
        %s424 = scalar_lea.vmem [#allocation8], %s423
        %p425 = pneg %p135
        %p426 = pneg %p132
        %p427 = pneg %p156
        %p428 = pneg %p153
        %p429 = pneg %p177
        %p430 = pneg %p174
        %p431 = pneg %p198
        %p432 = pneg %p195
        %p433 = pneg %p228
        %p434 = pneg %p225
        %s435 = sand.u32 %s215, 1
        %s436 = scalar_lea.sflag [#allocation5], %s435
        %s437 = sand.u32 %s215, 1
        %s438 = smul.addr %s437, 128
        %s439 = scalar_lea.vmem [#allocation14], %s438
        %s440 = smul.u32 %s33, 4
        %s441 = ssub.s32 %s440, 1
        %p442 = scmp.gt.s32.totalorder %s441, 0
        %s443 = scalar_select %p442, %s441, 0
        %s444 = smul.u32 4, %s33
        %s445 = sadd.s32 %s33, 1
        %s446 = smul.u32 %s445, 4
        %p447 = scmp.lt.s32.totalorder %s446, 15
        %s448 = scalar_select %p447, %s446, 15
        %s449 = smul.u32 %s32, 4
        %s450 = sadd.s32 %s449, %s33
        %vm452 = vcmask 57344
        %vm453 = vsmask.f32 256
        %vm454 = vmand %vm452, %vm453
        %v455 = vld [vmem:[#allocation2] sm:$0x1]
        %v456 = vsel %vm454, 0, %v455
        %457 = vst [vmem:[#allocation2] sm:$0x1] %v456
        %v458 = vld [vmem:[#allocation2 + $0xc] sm:$0x1]
        %v459 = vsel %vm454, 0, %v458
        %460 = vst [vmem:[#allocation2 + $0xc] sm:$0x1] %v459
        %v461 = vld [vmem:[#allocation2 + $0x18] sm:$0x1]
        %v462 = vsel %vm454, 0, %v461
        %463 = vst [vmem:[#allocation2 + $0x18] sm:$0x1] %v462
        %v464 = vld [vmem:[#allocation2 + $0x24] sm:$0x1]
        %v465 = vsel %vm454, 0, %v464
        %466 = vst [vmem:[#allocation2 + $0x24] sm:$0x1] %v465
        %v467 = vld [vmem:[#allocation2 + $0x30] sm:$0x1]
        %v468 = vsel %vm454, 0, %v467
        %469 = vst [vmem:[#allocation2 + $0x30] sm:$0x1] %v468
        %v470 = vld [vmem:[#allocation2 + $0x3c] sm:$0x1]
        %v471 = vsel %vm454, 0, %v470
        %472 = vst [vmem:[#allocation2 + $0x3c] sm:$0x1] %v471
        %vm473 = vsmask.f32 7938
        %vm474 = vmand %vm452, %vm473
        %v475 = vld [vmem:[#allocation2 + $0x8] sm:$0x1]
        %v476 = vsel %vm474, 0, %v475
        %477 = vst [vmem:[#allocation2 + $0x8] sm:$0x1] %v476
        %v478 = vld [vmem:[#allocation2 + $0x14] sm:$0x1]
        %v479 = vsel %vm474, 0, %v478
        %480 = vst [vmem:[#allocation2 + $0x14] sm:$0x1] %v479
        %v481 = vld [vmem:[#allocation2 + $0x20] sm:$0x1]
        %v482 = vsel %vm474, 0, %v481
        %483 = vst [vmem:[#allocation2 + $0x20] sm:$0x1] %v482
        %v484 = vld [vmem:[#allocation2 + $0x2c] sm:$0x1]
        %v485 = vsel %vm474, 0, %v484
        %486 = vst [vmem:[#allocation2 + $0x2c] sm:$0x1] %v485
        %v487 = vld [vmem:[#allocation2 + $0x38] sm:$0x1]
        %v488 = vsel %vm474, 0, %v487
        %489 = vst [vmem:[#allocation2 + $0x38] sm:$0x1] %v488
        %v490 = vld [vmem:[#allocation2 + $0x44] sm:$0x1]
        %v491 = vsel %vm474, 0, %v490
        %492 = vst [vmem:[#allocation2 + $0x44] sm:$0x1] %v491
        %v493 = vld [vmem:[%s380] sm:$0xff]
        %v494 = vld [vmem:[%s380 + $0x8] sm:$0xff]
        %v495 = vld [vmem:[%s380 + $0x10] sm:$0xff]
        %v496 = vld [vmem:[%s380 + $0x18] sm:$0xff]
        %v497 = vld [vmem:[%s380 + $0x20] sm:$0xff]
        %v498 = vld [vmem:[%s380 + $0x28] sm:$0xff]
        %v499 = vld [vmem:[%s380 + $0x30] sm:$0xff]
        %v500 = vld [vmem:[%s380 + $0x38] sm:$0xff]
        %v501 = vpack.c.bf16 %v494, %v493
        %v502 = vpack.c.bf16 %v496, %v495
        %v503 = vpack.c.bf16 %v498, %v497
        %v504 = vpack.c.bf16 %v500, %v499
        %v509 = vunpack.c.l.b16 %v501
        %v510 = vunpack.c.h.b16 %v501
        %v511 = vunpack.c.l.b16 %v502
        %v512 = vunpack.c.h.b16 %v502
        %v513 = vunpack.c.l.b16 %v503
        %v514 = vunpack.c.h.b16 %v503
        %v515 = vunpack.c.l.b16 %v504
        %v516 = vunpack.c.h.b16 %v504
        %v517 = vpack.c.b16 %v509, %v509
        %v518 = vpack.c.b16 %v510, %v510
        %v519 = vpack.c.b16 %v511, %v511
        %v520 = vpack.c.b16 %v512, %v512
        %v521 = vpack.c.b16 %v513, %v513
        %v522 = vpack.c.b16 %v514, %v514
        %v523 = vpack.c.b16 %v515, %v515
        %v524 = vpack.c.b16 %v516, %v516
        %vm525 = vsmask.f32 4368
        %vm526 = vmor %vm453, %vm525
        %v528 = vshrl.u32 %v517, 16
        %v530 = vrot.slane %v528, 7
        %v531 = vshll.u32 %v517, 16
        %v533 = vor.u32 %v530, %v531
        %v534 = vrot.slane %v530, 4
        %v536 = vshrl.u32 %v518, 16
        %v538 = vrot.slane %v536, 7
        %v539 = vshll.u32 %v518, 16
        %v541 = vor.u32 %v538, %v539
        %v542 = vsel %vm526, %v534, %v541
        %v543 = vrot.slane %v538, 4
        %v545 = vshrl.u32 %v519, 16
        %v547 = vrot.slane %v545, 7
        %v548 = vshll.u32 %v519, 16
        %v550 = vor.u32 %v547, %v548
        %v551 = vrot.slane %v547, 4
        %v553 = vshrl.u32 %v520, 16
        %v555 = vrot.slane %v553, 7
        %v556 = vshll.u32 %v520, 16
        %v558 = vor.u32 %v555, %v556
        %v559 = vsel %vm526, %v551, %v558
        %v560 = vrot.slane %v555, 4
        %v562 = vshrl.u32 %v521, 16
        %v564 = vrot.slane %v562, 7
        %v565 = vshll.u32 %v521, 16
        %v567 = vor.u32 %v564, %v565
        %v568 = vrot.slane %v564, 4
        %v570 = vshrl.u32 %v522, 16
        %v572 = vrot.slane %v570, 7
        %v573 = vshll.u32 %v522, 16
        %v575 = vor.u32 %v572, %v573
        %v576 = vsel %vm526, %v568, %v575
        %v577 = vrot.slane %v572, 4
        %v579 = vshrl.u32 %v523, 16
        %v581 = vrot.slane %v579, 7
        %v582 = vshll.u32 %v523, 16
        %v584 = vor.u32 %v581, %v582
        %v585 = vrot.slane %v581, 4
        %v587 = vshrl.u32 %v524, 16
        %v589 = vrot.slane %v587, 7
        %v590 = vshll.u32 %v524, 16
        %v592 = vor.u32 %v589, %v590
        %v593 = vsel %vm526, %v585, %v592
        %v594 = vrot.slane %v589, 4
        %s607 = scalar_lea.vmem [#allocation2], 12
        %vm608 = vcmask 60416
        %vm609 = vmand %vm608, %vm473
        %v610 = vld [vmem:[%s607] sm:$0xf]
        %v611 = vsel %vm609, %v533, %v610
        %612 = vst [vmem:[%s607] sm:$0xf] %v611
        %vm613 = vcmask 60416
        %614 = vst.msk [vmem:[%s607 + $0x4] sm:$0xf] %vm613, %v542
        %v615 = vld [vmem:[%s607 + $0x8] sm:$0x1]
        %v616 = vsel %vm454, %v543, %v615
        %617 = vst [vmem:[%s607 + $0x8] sm:$0x1] %v616
        %v618 = vld [vmem:[%s607 + $0xc] sm:$0xf]
        %v619 = vsel %vm609, %v550, %v618
        %620 = vst [vmem:[%s607 + $0xc] sm:$0xf] %v619
        %621 = vst.msk [vmem:[%s607 + $0x10] sm:$0xf] %vm613, %v559
        %v622 = vld [vmem:[%s607 + $0x14] sm:$0x1]
        %v623 = vsel %vm454, %v560, %v622
        %624 = vst [vmem:[%s607 + $0x14] sm:$0x1] %v623
        %v625 = vld [vmem:[%s607 + $0x18] sm:$0xf]
        %v626 = vsel %vm609, %v567, %v625
        %627 = vst [vmem:[%s607 + $0x18] sm:$0xf] %v626
        %628 = vst.msk [vmem:[%s607 + $0x1c] sm:$0xf] %vm613, %v576
        %v629 = vld [vmem:[%s607 + $0x20] sm:$0x1]
        %v630 = vsel %vm454, %v577, %v629
        %631 = vst [vmem:[%s607 + $0x20] sm:$0x1] %v630
        %v632 = vld [vmem:[%s607 + $0x24] sm:$0xf]
        %v633 = vsel %vm609, %v584, %v632
        %634 = vst [vmem:[%s607 + $0x24] sm:$0xf] %v633
        %635 = vst.msk [vmem:[%s607 + $0x28] sm:$0xf] %vm613, %v593
        %v636 = vld [vmem:[%s607 + $0x2c] sm:$0x1]
        %v637 = vsel %vm454, %v594, %v636
        %638 = vst [vmem:[%s607 + $0x2c] sm:$0x1] %v637
        %p639 = scmp.eq.s32.totalorder %s33, 0
        // Predicated region
        $region69: #{tpu_custom_call.1} parent=43 // pred_check
          %p640 = pneg %p639
        $region70: #{tpu_custom_call.1} parent=43 // pred_check_branch
          %642 = sbr.rel (%p640) target = $region72
        $region71: #{tpu_custom_call.1} parent=43 // pred_region
          %v643 = vld [vmem:[#allocation2] sm:$0xf]
          %v644 = vsel %vm609, 0, %v643
          %645 = vst [vmem:[#allocation2] sm:$0xf] %v644
          %646 = vst.msk [vmem:[#allocation2 + $0x4] sm:$0xf] %vm613, 0
          %v647 = vld [vmem:[#allocation2 + $0x8] sm:$0x1]
          %v648 = vsel %vm454, 0, %v647
          %649 = vst [vmem:[#allocation2 + $0x8] sm:$0x1] %v648
        $region72: #{tpu_custom_call.1} parent=43 // pred_fallthru
          _
        %p650 = scmp.gt.s32.totalorder %s33, 0
        // Predicated region
        $region73: #{tpu_custom_call.1} parent=43 // pred_check
          %p651 = pneg %p650
        $region74: #{tpu_custom_call.1} parent=43 // pred_check_branch
          %653 = sbr.rel (%p651) target = $region76
        $region75: #{tpu_custom_call.1} parent=43 // pred_region
          %v654 = vld [vmem:[%s371] sm:$0xff]
          %v655 = vld [vmem:[%s371 + $0x8] sm:$0xff]
          %v656 = vpack.c.bf16 %v655, %v654
          %v658 = vunpack.c.l.b16 %v656
          %v659 = vunpack.c.h.b16 %v656
          %v660 = vpack.c.b16 %v658, %v658
          %v661 = vpack.c.b16 %v659, %v659
          %v663 = vshrl.u32 %v660, 16
          %v665 = vrot.slane %v663, 7
          %v666 = vshll.u32 %v660, 16
          %v668 = vor.u32 %v665, %v666
          %v669 = vrot.slane %v665, 4
          %v671 = vshrl.u32 %v661, 16
          %v673 = vrot.slane %v671, 7
          %v674 = vshll.u32 %v661, 16
          %v676 = vor.u32 %v673, %v674
          %v677 = vsel %vm526, %v669, %v676
          %v678 = vrot.slane %v673, 4
          %v682 = vld [vmem:[#allocation2] sm:$0xf]
          %v683 = vsel %vm609, %v668, %v682
          %684 = vst [vmem:[#allocation2] sm:$0xf] %v683
          %685 = vst.msk [vmem:[#allocation2 + $0x4] sm:$0xf] %vm613, %v677
          %v686 = vld [vmem:[#allocation2 + $0x8] sm:$0x1]
          %v687 = vsel %vm454, %v678, %v686
          %688 = vst [vmem:[#allocation2 + $0x8] sm:$0x1] %v687
        $region76: #{tpu_custom_call.1} parent=43 // pred_fallthru
          _
        %p689 = scmp.eq.s32.totalorder %s33, 3
        // Predicated region
        $region77: #{tpu_custom_call.1} parent=43 // pred_check
          %p690 = pneg %p689
        $region78: #{tpu_custom_call.1} parent=43 // pred_check_branch
          %692 = sbr.rel (%p690) target = $region80
        $region79: #{tpu_custom_call.1} parent=43 // pred_region
          %s693 = scalar_lea.vmem [#allocation2], 60
          %v694 = vld [vmem:[%s693] sm:$0xf]
          %v695 = vsel %vm609, 0, %v694
          %696 = vst [vmem:[%s693] sm:$0xf] %v695
          %697 = vst.msk [vmem:[%s693 + $0x4] sm:$0xf] %vm613, 0
          %v698 = vld [vmem:[%s693 + $0x8] sm:$0x1]
          %v699 = vsel %vm454, 0, %v698
          %700 = vst [vmem:[%s693 + $0x8] sm:$0x1] %v699
        $region80: #{tpu_custom_call.1} parent=43 // pred_fallthru
          _
        %p701 = scmp.lt.s32.totalorder %s33, 3
        // Predicated region
        $region81: #{tpu_custom_call.1} parent=43 // pred_check
          %p702 = pneg %p701
        $region82: #{tpu_custom_call.1} parent=43 // pred_check_branch
          %704 = sbr.rel (%p702) target = $region84
        $region83: #{tpu_custom_call.1} parent=43 // pred_region
          %v705 = vld [vmem:[%s389] sm:$0xff]
          %v706 = vld [vmem:[%s389 + $0x8] sm:$0xff]
          %v707 = vpack.c.bf16 %v706, %v705
          %v709 = vunpack.c.l.b16 %v707
          %v710 = vunpack.c.h.b16 %v707
          %v711 = vpack.c.b16 %v709, %v709
          %v712 = vpack.c.b16 %v710, %v710
          %v714 = vshrl.u32 %v711, 16
          %v716 = vrot.slane %v714, 7
          %v717 = vshll.u32 %v711, 16
          %v719 = vor.u32 %v716, %v717
          %v720 = vrot.slane %v716, 4
          %v722 = vshrl.u32 %v712, 16
          %v724 = vrot.slane %v722, 7
          %v725 = vshll.u32 %v712, 16
          %v727 = vor.u32 %v724, %v725
          %v728 = vsel %vm526, %v720, %v727
          %v729 = vrot.slane %v724, 4
          %s733 = scalar_lea.vmem [#allocation2], 60
          %v734 = vld [vmem:[%s733] sm:$0xf]
          %v735 = vsel %vm609, %v719, %v734
          %736 = vst [vmem:[%s733] sm:$0xf] %v735
          %737 = vst.msk [vmem:[%s733 + $0x4] sm:$0xf] %vm613, %v728
          %v738 = vld [vmem:[%s733 + $0x8] sm:$0x1]
          %v739 = vsel %vm454, %v729, %v738
          %740 = vst [vmem:[%s733 + $0x8] sm:$0x1] %v739
        $region84: #{tpu_custom_call.1} parent=43 // pred_fallthru
          _
        %v741 = vld [vmem:[#allocation2] sm:$0xf]
        %v742 = vld [vmem:[#allocation2 + $0x4] sm:$0xf]
        %v743 = vld [vmem:[#allocation2 + $0xc] sm:$0xf]
        %v744 = vld [vmem:[#allocation2 + $0x10] sm:$0xf]
        %v745 = vld [vmem:[#allocation2 + $0x18] sm:$0xf]
        %v746 = vld [vmem:[#allocation2 + $0x1c] sm:$0xf]
        %v747 = vld [vmem:[#allocation2 + $0x24] sm:$0xf]
        %v748 = vld [vmem:[#allocation2 + $0x28] sm:$0xf]
        %v749 = vld [vmem:[#allocation9] sm:$0xf]
        %v750 = vld [vmem:[#allocation2 + $0x8] sm:$0x1]
        %v751 = vld [vmem:[#allocation2 + $0x14] sm:$0x1]
        %v752 = vld [vmem:[#allocation2 + $0x20] sm:$0x1]
        %v753 = vld [vmem:[#allocation2 + $0x2c] sm:$0x1]
        %vm754 = vsmask.f32 3328
        %vm755 = vsmask.f32 7440
        %vm756 = vmor %vm754, %vm755
        %v758 = vshrl.u32 %v741, 16
        %v760 = vrot.slane %v758, 4
        %v761 = vshll.u32 %v741, 16
        %v763 = vrot.slane %v761, 5
        %v764 = vor.u32 %v760, %v763
        %v765 = vrot.slane %v764, 4
        %v767 = vshll.u32 %v742, 16
        %v769 = vrot.slane %v767, 5
        %v770 = vsel %vm756, %v765, %v769
        %v771 = vshrl.u32 %v742, 16
        %v773 = vrot.slane %v771, 4
        %v774 = vor.u32 %v773, %v769
        %v775 = vrot.slane %v774, 4
        %v777 = vshll.u32 %v750, 16
        %v779 = vrot.slane %v777, 5
        %v780 = vsel %vm756, %v775, %v779
        %v782 = vshrl.u32 %v743, 16
        %v784 = vrot.slane %v782, 4
        %v785 = vshll.u32 %v743, 16
        %v787 = vrot.slane %v785, 5
        %v788 = vor.u32 %v784, %v787
        %v789 = vrot.slane %v788, 4
        %v791 = vshll.u32 %v744, 16
        %v793 = vrot.slane %v791, 5
        %v794 = vsel %vm756, %v789, %v793
        %v795 = vshrl.u32 %v744, 16
        %v797 = vrot.slane %v795, 4
        %v798 = vor.u32 %v797, %v793
        %v799 = vrot.slane %v798, 4
        %v801 = vshll.u32 %v751, 16
        %v803 = vrot.slane %v801, 5
        %v804 = vsel %vm756, %v799, %v803
        %v806 = vshrl.u32 %v745, 16
        %v808 = vrot.slane %v806, 4
        %v809 = vshll.u32 %v745, 16
        %v811 = vrot.slane %v809, 5
        %v812 = vor.u32 %v808, %v811
        %v813 = vrot.slane %v812, 4
        %v815 = vshll.u32 %v746, 16
        %v817 = vrot.slane %v815, 5
        %v818 = vsel %vm756, %v813, %v817
        %v819 = vshrl.u32 %v746, 16
        %v821 = vrot.slane %v819, 4
        %v822 = vor.u32 %v821, %v817
        %v823 = vrot.slane %v822, 4
        %v825 = vshll.u32 %v752, 16
        %v827 = vrot.slane %v825, 5
        %v828 = vsel %vm756, %v823, %v827
        %v830 = vshrl.u32 %v747, 16
        %v832 = vrot.slane %v830, 4
        %v833 = vshll.u32 %v747, 16
        %v835 = vrot.slane %v833, 5
        %v836 = vor.u32 %v832, %v835
        %v837 = vrot.slane %v836, 4
        %v839 = vshll.u32 %v748, 16
        %v841 = vrot.slane %v839, 5
        %v842 = vsel %vm756, %v837, %v841
        %v843 = vshrl.u32 %v748, 16
        %v845 = vrot.slane %v843, 4
        %v846 = vor.u32 %v845, %v841
        %v847 = vrot.slane %v846, 4
        %v849 = vshll.u32 %v753, 16
        %v851 = vrot.slane %v849, 5
        %v852 = vsel %vm756, %v847, %v851
        %s853 = scalar_lea.vmem [#allocation9], 4
        %v854 = vld [vmem:[%s853] sm:$0xf]
        %v855 = vunpack.c.l.b16 %v770
        %v856 = vunpack.c.l.b16 %v780
        %v857 = vunpack.c.l.b16 %v794
        %v858 = vunpack.c.l.b16 %v804
        %v859 = vunpack.c.l.b16 %v818
        %v860 = vunpack.c.l.b16 %v828
        %v861 = vunpack.c.l.b16 %v842
        %v862 = vunpack.c.l.b16 %v852
        %v863 = vpack.c.b16 %v856, %v855
        %v864 = vpack.c.b16 %v858, %v857
        %v865 = vpack.c.b16 %v860, %v859
        %v866 = vpack.c.b16 %v862, %v861
        %vm867 = vcmask 64512
        %v869 = vsel %vm867, %v863, 0
        %v872 = vsel %vm867, %v864, 0
        %v875 = vsel %vm867, %v865, 0
        %v878 = vsel %vm867, %v866, 0
        %vm880 = vcmask 1043456
        %v882 = vsel %vm880, %v854, 0
        %884 = vmatprep.subr.bf16.mxu0 0
        %885 = vmatpush1.bf16.msra.mxu0 %v882
        %886 = vmatprep.subr.bf16.mxu0 0
        %887 = vmatpush1.bf16.msra.mxu0 0
        %888 = vmatprep.subr.bf16.mxu0 0
        %889 = vmatpush1.bf16.msra.mxu0 0
        %890 = vmatprep.subr.bf16.mxu0 0
        %891 = vmatpush1.bf16.msra.mxu0 0
        %892 = vmatprep.subr.bf16.mxu0 0
        %893 = vmatpush1.bf16.msra.mxu0 0
        %894 = vmatprep.subr.bf16.mxu0 0
        %895 = vmatpush1.bf16.msra.mxu0 0
        %896 = vmatprep.subr.bf16.mxu0 0
        %897 = vmatpush1.bf16.msra.mxu0 0
        %898 = vmatprep.subr.bf16.mxu0 0
        %899 = vmatpush1.bf16.msra.mxu0 0
        %900 = vmatprep.subr.bf16.mxu0 0
        %901 = vmatpush1.bf16.msra.mxu0 0
        %902 = vmatprep.subr.bf16.mxu0 0
        %903 = vmatpush1.bf16.msra.mxu0 0
        %904 = vmatprep.subr.bf16.mxu0 0
        %905 = vmatpush1.bf16.msra.mxu0 0
        %906 = vmatprep.subr.bf16.mxu0 0
        %907 = vmatpush1.bf16.msra.mxu0 0
        %908 = vmatprep.subr.bf16.mxu0 0
        %909 = vmatpush1.bf16.msra.mxu0 0
        %910 = vmatprep.subr.bf16.mxu0 0
        %911 = vmatpush1.bf16.msra.mxu0 0
        %912 = vmatprep.subr.bf16.mxu0 0
        %913 = vmatpush1.bf16.msra.mxu0 0
        %914 = vmatprep.subr.bf16.mxu0 0
        %915 = vmatpush1.bf16.msra.mxu0 0
        %916 = vmatprep.mubr.bf16.mxu0 0
        %917 = vmatmul.mubr.bf16.gmra.mrb[0].mxu0 %v869
        %v918 = vpop.f32.mrb[0].mxu0
        %v919 = vadd.f32 0.0, %v918
        %v920 = vpop.f32.mrb[0].mxu0
        %v921 = vpop.f32.mrb[0].mxu0
        %v922 = vadd.f32 0.0, %v921
        %v923 = vpop.f32.mrb[0].mxu0
        %924 = vmatprep.mubr.bf16.mxu0 0
        %925 = vmatmul.mubr.bf16.gmra.mrb[0].mxu0 %v872
        %v926 = vpop.f32.mrb[0].mxu0
        %v927 = vadd.f32 0.0, %v926
        %v928 = vpop.f32.mrb[0].mxu0
        %v929 = vpop.f32.mrb[0].mxu0
        %v930 = vadd.f32 0.0, %v929
        %v931 = vpop.f32.mrb[0].mxu0
        %932 = vmatprep.mubr.bf16.mxu0 0
        %933 = vmatmul.mubr.bf16.gmra.mrb[0].mxu0 %v875
        %v934 = vpop.f32.mrb[0].mxu0
        %v935 = vadd.f32 0.0, %v934
        %v936 = vpop.f32.mrb[0].mxu0
        %v937 = vpop.f32.mrb[0].mxu0
        %v938 = vadd.f32 0.0, %v937
        %v939 = vpop.f32.mrb[0].mxu0
        %940 = vmatprep.mubr.bf16.mxu0 0
        %941 = vmatmul.mubr.bf16.gmra.mrb[0].mxu0 %v878
        %v942 = vpop.f32.mrb[0].mxu0
        %v943 = vadd.f32 0.0, %v942
        %v944 = vpop.f32.mrb[0].mxu0
        %v945 = vpop.f32.mrb[0].mxu0
        %v946 = vadd.f32 0.0, %v945
        %v947 = vpop.f32.mrb[0].mxu0
        %948 = vdwg.mxu0
        %v957 = vunpack.c.l.b16 %v741
        %v958 = vunpack.c.l.b16 %v742
        %v959 = vunpack.c.l.b16 %v743
        %v960 = vunpack.c.l.b16 %v744
        %v961 = vunpack.c.l.b16 %v745
        %v962 = vunpack.c.l.b16 %v746
        %v963 = vunpack.c.l.b16 %v747
        %v964 = vunpack.c.l.b16 %v748
        %v965 = vpack.c.b16 %v958, %v957
        %v966 = vpack.c.b16 %v960, %v959
        %v967 = vpack.c.b16 %v962, %v961
        %v968 = vpack.c.b16 %v964, %v963
        %v970 = vsel %vm867, %v965, 0
        %v973 = vsel %vm867, %v966, 0
        %v976 = vsel %vm867, %v967, 0
        %v979 = vsel %vm867, %v968, 0
        %v982 = vsel %vm880, %v749, 0
        %984 = vmatprep.subr.bf16.mxu0 0
        %985 = vmatpush1.bf16.msra.mxu0 %v982
        %986 = vmatprep.subr.bf16.mxu0 0
        %987 = vmatpush1.bf16.msra.mxu0 0
        %988 = vmatprep.subr.bf16.mxu0 0
        %989 = vmatpush1.bf16.msra.mxu0 0
        %990 = vmatprep.subr.bf16.mxu0 0
        %991 = vmatpush1.bf16.msra.mxu0 0
        %992 = vmatprep.subr.bf16.mxu0 0
        %993 = vmatpush1.bf16.msra.mxu0 0
        %994 = vmatprep.subr.bf16.mxu0 0
        %995 = vmatpush1.bf16.msra.mxu0 0
        %996 = vmatprep.subr.bf16.mxu0 0
        %997 = vmatpush1.bf16.msra.mxu0 0
        %998 = vmatprep.subr.bf16.mxu0 0
        %999 = vmatpush1.bf16.msra.mxu0 0
        %1000 = vmatprep.subr.bf16.mxu0 0
        %1001 = vmatpush1.bf16.msra.mxu0 0
        %1002 = vmatprep.subr.bf16.mxu0 0
        %1003 = vmatpush1.bf16.msra.mxu0 0
        %1004 = vmatprep.subr.bf16.mxu0 0
        %1005 = vmatpush1.bf16.msra.mxu0 0
        %1006 = vmatprep.subr.bf16.mxu0 0
        %1007 = vmatpush1.bf16.msra.mxu0 0
        %1008 = vmatprep.subr.bf16.mxu0 0
        %1009 = vmatpush1.bf16.msra.mxu0 0
        %1010 = vmatprep.subr.bf16.mxu0 0
        %1011 = vmatpush1.bf16.msra.mxu0 0
        %1012 = vmatprep.subr.bf16.mxu0 0
        %1013 = vmatpush1.bf16.msra.mxu0 0
        %1014 = vmatprep.subr.bf16.mxu0 0
        %1015 = vmatpush1.bf16.msra.mxu0 0
        %1016 = vmatprep.mubr.bf16.mxu0 0
        %1017 = vmatmul.mubr.bf16.gmra.mrb[0].mxu0 %v970
        %v1018 = vpop.f32.mrb[0].mxu0
        %v1019 = vadd.f32 %v919, %v1018
        %v1020 = vpop.f32.mrb[0].mxu0
        %v1021 = vpop.f32.mrb[0].mxu0
        %v1022 = vadd.f32 %v922, %v1021
        %v1023 = vpop.f32.mrb[0].mxu0
        %1024 = vmatprep.mubr.bf16.mxu0 0
        %1025 = vmatmul.mubr.bf16.gmra.mrb[0].mxu0 %v973
        %v1026 = vpop.f32.mrb[0].mxu0
        %v1027 = vadd.f32 %v927, %v1026
        %v1028 = vpop.f32.mrb[0].mxu0
        %v1029 = vpop.f32.mrb[0].mxu0
        %v1030 = vadd.f32 %v930, %v1029
        %v1031 = vpop.f32.mrb[0].mxu0
        %1032 = vmatprep.mubr.bf16.mxu0 0
        %1033 = vmatmul.mubr.bf16.gmra.mrb[0].mxu0 %v976
        %v1034 = vpop.f32.mrb[0].mxu0
        %v1035 = vadd.f32 %v935, %v1034
        %v1036 = vpop.f32.mrb[0].mxu0
        %v1037 = vpop.f32.mrb[0].mxu0
        %v1038 = vadd.f32 %v938, %v1037
        %v1039 = vpop.f32.mrb[0].mxu0
        %1040 = vmatprep.mubr.bf16.mxu0 0
        %1041 = vmatmul.mubr.bf16.gmra.mrb[0].mxu0 %v979
        %v1042 = vpop.f32.mrb[0].mxu0
        %v1043 = vadd.f32 %v943, %v1042
        %v1044 = vpop.f32.mrb[0].mxu0
        %v1045 = vpop.f32.mrb[0].mxu0
        %v1046 = vadd.f32 %v946, %v1045
        %v1047 = vpop.f32.mrb[0].mxu0
        %1048 = vdwg.mxu0
        %v1049 = vld [vmem:[#allocation2] sm:$0xe]
        %v1050 = vld [vmem:[#allocation2 + $0xc] sm:$0xe]
        %v1051 = vld [vmem:[#allocation2 + $0x18] sm:$0xe]
        %v1052 = vld [vmem:[#allocation2 + $0x24] sm:$0xe]
        %vm1061 = vcmask 1042432
        %vm1062 = vcmask 1046532
        %vm1063 = vmor %vm1061, %vm1062
        %v1064 = vrot.slane %v1049, 5
        %v1065 = vrot.slane %v1064, 4
        %v1066 = vrot.slane %v742, 5
        %v1067 = vsel %vm1063, %v1065, %v1066
        %v1068 = vrot.slane %v1066, 4
        %v1069 = vrot.slane %v750, 5
        %v1070 = vsel %vm1063, %v1068, %v1069
        %v1071 = vrot.slane %v1050, 5
        %v1072 = vrot.slane %v1071, 4
        %v1073 = vrot.slane %v744, 5
        %v1074 = vsel %vm1063, %v1072, %v1073
        %v1075 = vrot.slane %v1073, 4
        %v1076 = vrot.slane %v751, 5
        %v1077 = vsel %vm1063, %v1075, %v1076
        %v1078 = vrot.slane %v1051, 5
        %v1079 = vrot.slane %v1078, 4
        %v1080 = vrot.slane %v746, 5
        %v1081 = vsel %vm1063, %v1079, %v1080
        %v1082 = vrot.slane %v1080, 4
        %v1083 = vrot.slane %v752, 5
        %v1084 = vsel %vm1063, %v1082, %v1083
        %v1085 = vrot.slane %v1052, 5
        %v1086 = vrot.slane %v1085, 4
        %v1087 = vrot.slane %v748, 5
        %v1088 = vsel %vm1063, %v1086, %v1087
        %v1089 = vrot.slane %v1087, 4
        %v1090 = vrot.slane %v753, 5
        %v1091 = vsel %vm1063, %v1089, %v1090
        %s1092 = scalar_lea.vmem [#allocation9], 8
        %v1093 = vld [vmem:[%s1092] sm:$0xf]
        %v1094 = vunpack.c.l.b16 %v1067
        %v1095 = vunpack.c.l.b16 %v1070
        %v1096 = vunpack.c.l.b16 %v1074
        %v1097 = vunpack.c.l.b16 %v1077
        %v1098 = vunpack.c.l.b16 %v1081
        %v1099 = vunpack.c.l.b16 %v1084
        %v1100 = vunpack.c.l.b16 %v1088
        %v1101 = vunpack.c.l.b16 %v1091
        %v1102 = vpack.c.b16 %v1095, %v1094
        %v1103 = vpack.c.b16 %v1097, %v1096
        %v1104 = vpack.c.b16 %v1099, %v1098
        %v1105 = vpack.c.b16 %v1101, %v1100
        %v1107 = vsel %vm867, %v1102, 0
        %v1110 = vsel %vm867, %v1103, 0
        %v1113 = vsel %vm867, %v1104, 0
        %v1116 = vsel %vm867, %v1105, 0
        %v1119 = vsel %vm880, %v1093, 0
        %1121 = vmatprep.subr.bf16.mxu0 0
        %1122 = vmatpush1.bf16.msra.mxu0 %v1119
        %1123 = vmatprep.subr.bf16.mxu0 0
        %1124 = vmatpush1.bf16.msra.mxu0 0
        %1125 = vmatprep.subr.bf16.mxu0 0
        %1126 = vmatpush1.bf16.msra.mxu0 0
        %1127 = vmatprep.subr.bf16.mxu0 0
        %1128 = vmatpush1.bf16.msra.mxu0 0
        %1129 = vmatprep.subr.bf16.mxu0 0
        %1130 = vmatpush1.bf16.msra.mxu0 0
        %1131 = vmatprep.subr.bf16.mxu0 0
        %1132 = vmatpush1.bf16.msra.mxu0 0
        %1133 = vmatprep.subr.bf16.mxu0 0
        %1134 = vmatpush1.bf16.msra.mxu0 0
        %1135 = vmatprep.subr.bf16.mxu0 0
        %1136 = vmatpush1.bf16.msra.mxu0 0
        %1137 = vmatprep.subr.bf16.mxu0 0
        %1138 = vmatpush1.bf16.msra.mxu0 0
        %1139 = vmatprep.subr.bf16.mxu0 0
        %1140 = vmatpush1.bf16.msra.mxu0 0
        %1141 = vmatprep.subr.bf16.mxu0 0
        %1142 = vmatpush1.bf16.msra.mxu0 0
        %1143 = vmatprep.subr.bf16.mxu0 0
        %1144 = vmatpush1.bf16.msra.mxu0 0
        %1145 = vmatprep.subr.bf16.mxu0 0
        %1146 = vmatpush1.bf16.msra.mxu0 0
        %1147 = vmatprep.subr.bf16.mxu0 0
        %1148 = vmatpush1.bf16.msra.mxu0 0
        %1149 = vmatprep.subr.bf16.mxu0 0
        %1150 = vmatpush1.bf16.msra.mxu0 0
        %1151 = vmatprep.subr.bf16.mxu0 0
        %1152 = vmatpush1.bf16.msra.mxu0 0
        %1153 = vmatprep.mubr.bf16.mxu0 0
        %1154 = vmatmul.mubr.bf16.gmra.mrb[0].mxu0 %v1107
        %v1155 = vpop.f32.mrb[0].mxu0
        %v1156 = vadd.f32 0.0, %v1155
        %v1157 = vpop.f32.mrb[0].mxu0
        %v1158 = vpop.f32.mrb[0].mxu0
        %v1159 = vadd.f32 0.0, %v1158
        %v1160 = vpop.f32.mrb[0].mxu0
        %1161 = vmatprep.mubr.bf16.mxu0 0
        %1162 = vmatmul.mubr.bf16.gmra.mrb[0].mxu0 %v1110
        %v1163 = vpop.f32.mrb[0].mxu0
        %v1164 = vadd.f32 0.0, %v1163
        %v1165 = vpop.f32.mrb[0].mxu0
        %v1166 = vpop.f32.mrb[0].mxu0
        %v1167 = vadd.f32 0.0, %v1166
        %v1168 = vpop.f32.mrb[0].mxu0
        %1169 = vmatprep.mubr.bf16.mxu0 0
        %1170 = vmatmul.mubr.bf16.gmra.mrb[0].mxu0 %v1113
        %v1171 = vpop.f32.mrb[0].mxu0
        %v1172 = vadd.f32 0.0, %v1171
        %v1173 = vpop.f32.mrb[0].mxu0
        %v1174 = vpop.f32.mrb[0].mxu0
        %v1175 = vadd.f32 0.0, %v1174
        %v1176 = vpop.f32.mrb[0].mxu0
        %1177 = vmatprep.mubr.bf16.mxu0 0
        %1178 = vmatmul.mubr.bf16.gmra.mrb[0].mxu0 %v1116
        %v1179 = vpop.f32.mrb[0].mxu0
        %v1180 = vadd.f32 0.0, %v1179
        %v1181 = vpop.f32.mrb[0].mxu0
        %v1182 = vpop.f32.mrb[0].mxu0
        %v1183 = vadd.f32 0.0, %v1182
        %v1184 = vpop.f32.mrb[0].mxu0
        %1185 = vdwg.mxu0
        %v1186 = vadd.f32 %v1019, %v1156
        %v1187 = vadd.f32 %v1022, %v1159
        %v1188 = vadd.f32 %v1027, %v1164
        %v1189 = vadd.f32 %v1030, %v1167
        %v1190 = vadd.f32 %v1035, %v1172
        %v1191 = vadd.f32 %v1038, %v1175
        %v1192 = vadd.f32 %v1043, %v1180
        %v1193 = vadd.f32 %v1046, %v1183
        %v1194 = vld [vmem:[%s607] sm:$0xf]
        %v1195 = vld [vmem:[%s607 + $0x4] sm:$0xf]
        %v1196 = vld [vmem:[%s607 + $0xc] sm:$0xf]
        %v1197 = vld [vmem:[%s607 + $0x10] sm:$0xf]
        %v1198 = vld [vmem:[%s607 + $0x18] sm:$0xf]
        %v1199 = vld [vmem:[%s607 + $0x1c] sm:$0xf]
        %v1200 = vld [vmem:[%s607 + $0x24] sm:$0xf]
        %v1201 = vld [vmem:[%s607 + $0x28] sm:$0xf]
        %s1202 = scalar_lea.vmem [#allocation9], 12
        %v1203 = vld [vmem:[%s1202] sm:$0xf]
        %v1212 = vunpack.c.l.b16 %v1194
        %v1213 = vunpack.c.l.b16 %v1195
        %v1214 = vunpack.c.l.b16 %v1196
        %v1215 = vunpack.c.l.b16 %v1197
        %v1216 = vunpack.c.l.b16 %v1198
        %v1217 = vunpack.c.l.b16 %v1199
        %v1218 = vunpack.c.l.b16 %v1200
        %v1219 = vunpack.c.l.b16 %v1201
        %v1220 = vpack.c.b16 %v1213, %v1212
        %v1221 = vpack.c.b16 %v1215, %v1214
        %v1222 = vpack.c.b16 %v1217, %v1216
        %v1223 = vpack.c.b16 %v1219, %v1218
        %v1225 = vsel %vm867, %v1220, 0
        %v1228 = vsel %vm867, %v1221, 0
        %v1231 = vsel %vm867, %v1222, 0
        %v1234 = vsel %vm867, %v1223, 0
        %v1237 = vsel %vm880, %v1203, 0
        %1239 = vmatprep.subr.bf16.mxu0 0
        %1240 = vmatpush1.bf16.msra.mxu0 %v1237
        %1241 = vmatprep.subr.bf16.mxu0 0
        %1242 = vmatpush1.bf16.msra.mxu0 0
        %1243 = vmatprep.subr.bf16.mxu0 0
        %1244 = vmatpush1.bf16.msra.mxu0 0
        %1245 = vmatprep.subr.bf16.mxu0 0
        %1246 = vmatpush1.bf16.msra.mxu0 0
        %1247 = vmatprep.subr.bf16.mxu0 0
        %1248 = vmatpush1.bf16.msra.mxu0 0
        %1249 = vmatprep.subr.bf16.mxu0 0
        %1250 = vmatpush1.bf16.msra.mxu0 0
        %1251 = vmatprep.subr.bf16.mxu0 0
        %1252 = vmatpush1.bf16.msra.mxu0 0
        %1253 = vmatprep.subr.bf16.mxu0 0
        %1254 = vmatpush1.bf16.msra.mxu0 0
        %1255 = vmatprep.subr.bf16.mxu0 0
        %1256 = vmatpush1.bf16.msra.mxu0 0
        %1257 = vmatprep.subr.bf16.mxu0 0
        %1258 = vmatpush1.bf16.msra.mxu0 0
        %1259 = vmatprep.subr.bf16.mxu0 0
        %1260 = vmatpush1.bf16.msra.mxu0 0
        %1261 = vmatprep.subr.bf16.mxu0 0
        %1262 = vmatpush1.bf16.msra.mxu0 0
        %1263 = vmatprep.subr.bf16.mxu0 0
        %1264 = vmatpush1.bf16.msra.mxu0 0
        %1265 = vmatprep.subr.bf16.mxu0 0
        %1266 = vmatpush1.bf16.msra.mxu0 0
        %1267 = vmatprep.subr.bf16.mxu0 0
        %1268 = vmatpush1.bf16.msra.mxu0 0
        %1269 = vmatprep.subr.bf16.mxu0 0
        %1270 = vmatpush1.bf16.msra.mxu0 0
        %1271 = vmatprep.mubr.bf16.mxu0 0
        %1272 = vmatmul.mubr.bf16.gmra.mrb[0].mxu0 %v1225
        %v1273 = vpop.f32.mrb[0].mxu0
        %v1274 = vadd.f32 0.0, %v1273
        %v1275 = vpop.f32.mrb[0].mxu0
        %v1276 = vpop.f32.mrb[0].mxu0
        %v1277 = vadd.f32 0.0, %v1276
        %v1278 = vpop.f32.mrb[0].mxu0
        %1279 = vmatprep.mubr.bf16.mxu0 0
        %1280 = vmatmul.mubr.bf16.gmra.mrb[0].mxu0 %v1228
        %v1281 = vpop.f32.mrb[0].mxu0
        %v1282 = vadd.f32 0.0, %v1281
        %v1283 = vpop.f32.mrb[0].mxu0
        %v1284 = vpop.f32.mrb[0].mxu0
        %v1285 = vadd.f32 0.0, %v1284
        %v1286 = vpop.f32.mrb[0].mxu0
        %1287 = vmatprep.mubr.bf16.mxu0 0
        %1288 = vmatmul.mubr.bf16.gmra.mrb[0].mxu0 %v1231
        %v1289 = vpop.f32.mrb[0].mxu0
        %v1290 = vadd.f32 0.0, %v1289
        %v1291 = vpop.f32.mrb[0].mxu0
        %v1292 = vpop.f32.mrb[0].mxu0
        %v1293 = vadd.f32 0.0, %v1292
        %v1294 = vpop.f32.mrb[0].mxu0
        %1295 = vmatprep.mubr.bf16.mxu0 0
        %1296 = vmatmul.mubr.bf16.gmra.mrb[0].mxu0 %v1234
        %v1297 = vpop.f32.mrb[0].mxu0
        %v1298 = vadd.f32 0.0, %v1297
        %v1299 = vpop.f32.mrb[0].mxu0
        %v1300 = vpop.f32.mrb[0].mxu0
        %v1301 = vadd.f32 0.0, %v1300
        %v1302 = vpop.f32.mrb[0].mxu0
        %1303 = vdwg.mxu0
        %v1304 = vadd.f32 %v1186, %v1274
        %v1305 = vadd.f32 %v1187, %v1277
        %v1306 = vadd.f32 %v1188, %v1282
        %v1307 = vadd.f32 %v1189, %v1285
        %v1308 = vadd.f32 %v1190, %v1290
        %v1309 = vadd.f32 %v1191, %v1293
        %v1310 = vadd.f32 %v1192, %v1298
        %v1311 = vadd.f32 %v1193, %v1301
        %v1312 = vld [vmem:[%s607] sm:$0xf]
        %v1313 = vld [vmem:[%s607 + $0x4] sm:$0xf]
        %v1314 = vld [vmem:[%s607 + $0x8] sm:$0x1]
        %v1315 = vld [vmem:[%s607 + $0xc] sm:$0xf]
        %v1316 = vld [vmem:[%s607 + $0x10] sm:$0xf]
        %v1317 = vld [vmem:[%s607 + $0x14] sm:$0x1]
        %v1318 = vld [vmem:[%s607 + $0x18] sm:$0xf]
        %v1319 = vld [vmem:[%s607 + $0x1c] sm:$0xf]
        %v1320 = vld [vmem:[%s607 + $0x20] sm:$0x1]
        %v1321 = vld [vmem:[%s607 + $0x24] sm:$0xf]
        %v1322 = vld [vmem:[%s607 + $0x28] sm:$0xf]
        %v1323 = vld [vmem:[%s607 + $0x2c] sm:$0x1]
        %v1325 = vshrl.u32 %v1312, 16
        %v1327 = vrot.slane %v1325, 4
        %v1328 = vshll.u32 %v1312, 16
        %v1330 = vrot.slane %v1328, 5
        %v1331 = vor.u32 %v1327, %v1330
        %v1332 = vrot.slane %v1331, 4
        %v1334 = vshll.u32 %v1313, 16
        %v1336 = vrot.slane %v1334, 5
        %v1337 = vsel %vm756, %v1332, %v1336
        %v1338 = vshrl.u32 %v1313, 16
        %v1340 = vrot.slane %v1338, 4
        %v1341 = vor.u32 %v1340, %v1336
        %v1342 = vrot.slane %v1341, 4
        %v1344 = vshll.u32 %v1314, 16
        %v1346 = vrot.slane %v1344, 5
        %v1347 = vsel %vm756, %v1342, %v1346
        %v1349 = vshrl.u32 %v1315, 16
        %v1351 = vrot.slane %v1349, 4
        %v1352 = vshll.u32 %v1315, 16
        %v1354 = vrot.slane %v1352, 5
        %v1355 = vor.u32 %v1351, %v1354
        %v1356 = vrot.slane %v1355, 4
        %v1358 = vshll.u32 %v1316, 16
        %v1360 = vrot.slane %v1358, 5
        %v1361 = vsel %vm756, %v1356, %v1360
        %v1362 = vshrl.u32 %v1316, 16
        %v1364 = vrot.slane %v1362, 4
        %v1365 = vor.u32 %v1364, %v1360
        %v1366 = vrot.slane %v1365, 4
        %v1368 = vshll.u32 %v1317, 16
        %v1370 = vrot.slane %v1368, 5
        %v1371 = vsel %vm756, %v1366, %v1370
        %v1373 = vshrl.u32 %v1318, 16
        %v1375 = vrot.slane %v1373, 4
        %v1376 = vshll.u32 %v1318, 16
        %v1378 = vrot.slane %v1376, 5
        %v1379 = vor.u32 %v1375, %v1378
        %v1380 = vrot.slane %v1379, 4
        %v1382 = vshll.u32 %v1319, 16
        %v1384 = vrot.slane %v1382, 5
        %v1385 = vsel %vm756, %v1380, %v1384
        %v1386 = vshrl.u32 %v1319, 16
        %v1388 = vrot.slane %v1386, 4
        %v1389 = vor.u32 %v1388, %v1384
        %v1390 = vrot.slane %v1389, 4
        %v1392 = vshll.u32 %v1320, 16
        %v1394 = vrot.slane %v1392, 5
        %v1395 = vsel %vm756, %v1390, %v1394
        %v1397 = vshrl.u32 %v1321, 16
        %v1399 = vrot.slane %v1397, 4
        %v1400 = vshll.u32 %v1321, 16
        %v1402 = vrot.slane %v1400, 5
        %v1403 = vor.u32 %v1399, %v1402
        %v1404 = vrot.slane %v1403, 4
        %v1406 = vshll.u32 %v1322, 16
        %v1408 = vrot.slane %v1406, 5
        %v1409 = vsel %vm756, %v1404, %v1408
        %v1410 = vshrl.u32 %v1322, 16
        %v1412 = vrot.slane %v1410, 4
        %v1413 = vor.u32 %v1412, %v1408
        %v1414 = vrot.slane %v1413, 4
        %v1416 = vshll.u32 %v1323, 16
        %v1418 = vrot.slane %v1416, 5
        %v1419 = vsel %vm756, %v1414, %v1418
        %s1420 = scalar_lea.vmem [#allocation9], 16
        %v1421 = vld [vmem:[%s1420] sm:$0xf]
        %v1422 = vunpack.c.l.b16 %v1337
        %v1423 = vunpack.c.l.b16 %v1347
        %v1424 = vunpack.c.l.b16 %v1361
        %v1425 = vunpack.c.l.b16 %v1371
        %v1426 = vunpack.c.l.b16 %v1385
        %v1427 = vunpack.c.l.b16 %v1395
        %v1428 = vunpack.c.l.b16 %v1409
        %v1429 = vunpack.c.l.b16 %v1419
        %v1430 = vpack.c.b16 %v1423, %v1422
        %v1431 = vpack.c.b16 %v1425, %v1424
        %v1432 = vpack.c.b16 %v1427, %v1426
        %v1433 = vpack.c.b16 %v1429, %v1428
        %v1435 = vsel %vm867, %v1430, 0
        %v1438 = vsel %vm867, %v1431, 0
        %v1441 = vsel %vm867, %v1432, 0
        %v1444 = vsel %vm867, %v1433, 0
        %v1447 = vsel %vm880, %v1421, 0
        %1449 = vmatprep.subr.bf16.mxu0 0
        %1450 = vmatpush1.bf16.msra.mxu0 %v1447
        %1451 = vmatprep.subr.bf16.mxu0 0
        %1452 = vmatpush1.bf16.msra.mxu0 0
        %1453 = vmatprep.subr.bf16.mxu0 0
        %1454 = vmatpush1.bf16.msra.mxu0 0
        %1455 = vmatprep.subr.bf16.mxu0 0
        %1456 = vmatpush1.bf16.msra.mxu0 0
        %1457 = vmatprep.subr.bf16.mxu0 0
        %1458 = vmatpush1.bf16.msra.mxu0 0
        %1459 = vmatprep.subr.bf16.mxu0 0
        %1460 = vmatpush1.bf16.msra.mxu0 0
        %1461 = vmatprep.subr.bf16.mxu0 0
        %1462 = vmatpush1.bf16.msra.mxu0 0
        %1463 = vmatprep.subr.bf16.mxu0 0
        %1464 = vmatpush1.bf16.msra.mxu0 0
        %1465 = vmatprep.subr.bf16.mxu0 0
        %1466 = vmatpush1.bf16.msra.mxu0 0
        %1467 = vmatprep.subr.bf16.mxu0 0
        %1468 = vmatpush1.bf16.msra.mxu0 0
        %1469 = vmatprep.subr.bf16.mxu0 0
        %1470 = vmatpush1.bf16.msra.mxu0 0
        %1471 = vmatprep.subr.bf16.mxu0 0
        %1472 = vmatpush1.bf16.msra.mxu0 0
        %1473 = vmatprep.subr.bf16.mxu0 0
        %1474 = vmatpush1.bf16.msra.mxu0 0
        %1475 = vmatprep.subr.bf16.mxu0 0
        %1476 = vmatpush1.bf16.msra.mxu0 0
        %1477 = vmatprep.subr.bf16.mxu0 0
        %1478 = vmatpush1.bf16.msra.mxu0 0
        %1479 = vmatprep.subr.bf16.mxu0 0
        %1480 = vmatpush1.bf16.msra.mxu0 0
        %1481 = vmatprep.mubr.bf16.mxu0 0
        %1482 = vmatmul.mubr.bf16.gmra.mrb[0].mxu0 %v1435
        %v1483 = vpop.f32.mrb[0].mxu0
        %v1484 = vadd.f32 0.0, %v1483
        %v1485 = vpop.f32.mrb[0].mxu0
        %v1486 = vpop.f32.mrb[0].mxu0
        %v1487 = vadd.f32 0.0, %v1486
        %v1488 = vpop.f32.mrb[0].mxu0
        %1489 = vmatprep.mubr.bf16.mxu0 0
        %1490 = vmatmul.mubr.bf16.gmra.mrb[0].mxu0 %v1438
        %v1491 = vpop.f32.mrb[0].mxu0
        %v1492 = vadd.f32 0.0, %v1491
        %v1493 = vpop.f32.mrb[0].mxu0
        %v1494 = vpop.f32.mrb[0].mxu0
        %v1495 = vadd.f32 0.0, %v1494
        %v1496 = vpop.f32.mrb[0].mxu0
        %1497 = vmatprep.mubr.bf16.mxu0 0
        %1498 = vmatmul.mubr.bf16.gmra.mrb[0].mxu0 %v1441
        %v1499 = vpop.f32.mrb[0].mxu0
        %v1500 = vadd.f32 0.0, %v1499
        %v1501 = vpop.f32.mrb[0].mxu0
        %v1502 = vpop.f32.mrb[0].mxu0
        %v1503 = vadd.f32 0.0, %v1502
        %v1504 = vpop.f32.mrb[0].mxu0
        %1505 = vmatprep.mubr.bf16.mxu0 0
        %1506 = vmatmul.mubr.bf16.gmra.mrb[0].mxu0 %v1444
        %v1507 = vpop.f32.mrb[0].mxu0
        %v1508 = vadd.f32 0.0, %v1507
        %v1509 = vpop.f32.mrb[0].mxu0
        %v1510 = vpop.f32.mrb[0].mxu0
        %v1511 = vadd.f32 0.0, %v1510
        %v1512 = vpop.f32.mrb[0].mxu0
        %1513 = vdwg.mxu0
        %v1514 = vadd.f32 %v1304, %v1484
        %v1515 = vadd.f32 %v1305, %v1487
        %v1516 = vadd.f32 %v1306, %v1492
        %v1517 = vadd.f32 %v1307, %v1495
        %v1518 = vadd.f32 %v1308, %v1500
        %v1519 = vadd.f32 %v1309, %v1503
        %v1520 = vadd.f32 %v1310, %v1508
        %v1521 = vadd.f32 %v1311, %v1511
        %v1522 = vld [vmem:[%s607] sm:$0xe]
        %v1523 = vld [vmem:[%s607 + $0xc] sm:$0xe]
        %v1524 = vld [vmem:[%s607 + $0x18] sm:$0xe]
        %v1525 = vld [vmem:[%s607 + $0x24] sm:$0xe]
        %v1538 = vrot.slane %v1522, 5
        %v1539 = vrot.slane %v1538, 4
        %v1540 = vrot.slane %v1313, 5
        %v1541 = vsel %vm1063, %v1539, %v1540
        %v1542 = vrot.slane %v1540, 4
        %v1543 = vrot.slane %v1314, 5
        %v1544 = vsel %vm1063, %v1542, %v1543
        %v1545 = vrot.slane %v1523, 5
        %v1546 = vrot.slane %v1545, 4
        %v1547 = vrot.slane %v1316, 5
        %v1548 = vsel %vm1063, %v1546, %v1547
        %v1549 = vrot.slane %v1547, 4
        %v1550 = vrot.slane %v1317, 5
        %v1551 = vsel %vm1063, %v1549, %v1550
        %v1552 = vrot.slane %v1524, 5
        %v1553 = vrot.slane %v1552, 4
        %v1554 = vrot.slane %v1319, 5
        %v1555 = vsel %vm1063, %v1553, %v1554
        %v1556 = vrot.slane %v1554, 4
        %v1557 = vrot.slane %v1320, 5
        %v1558 = vsel %vm1063, %v1556, %v1557
        %v1559 = vrot.slane %v1525, 5
        %v1560 = vrot.slane %v1559, 4
        %v1561 = vrot.slane %v1322, 5
        %v1562 = vsel %vm1063, %v1560, %v1561
        %v1563 = vrot.slane %v1561, 4
        %v1564 = vrot.slane %v1323, 5
        %v1565 = vsel %vm1063, %v1563, %v1564
        %s1566 = scalar_lea.vmem [#allocation9], 20
        %v1567 = vld [vmem:[%s1566] sm:$0xf]
        %v1568 = vunpack.c.l.b16 %v1541
        %v1569 = vunpack.c.l.b16 %v1544
        %v1570 = vunpack.c.l.b16 %v1548
        %v1571 = vunpack.c.l.b16 %v1551
        %v1572 = vunpack.c.l.b16 %v1555
        %v1573 = vunpack.c.l.b16 %v1558
        %v1574 = vunpack.c.l.b16 %v1562
        %v1575 = vunpack.c.l.b16 %v1565
        %v1576 = vpack.c.b16 %v1569, %v1568
        %v1577 = vpack.c.b16 %v1571, %v1570
        %v1578 = vpack.c.b16 %v1573, %v1572
        %v1579 = vpack.c.b16 %v1575, %v1574
        %v1581 = vsel %vm867, %v1576, 0
        %v1584 = vsel %vm867, %v1577, 0
        %v1587 = vsel %vm867, %v1578, 0
        %v1590 = vsel %vm867, %v1579, 0
        %v1593 = vsel %vm880, %v1567, 0
        %1595 = vmatprep.subr.bf16.mxu0 0
        %1596 = vmatpush1.bf16.msra.mxu0 %v1593
        %1597 = vmatprep.subr.bf16.mxu0 0
        %1598 = vmatpush1.bf16.msra.mxu0 0
        %1599 = vmatprep.subr.bf16.mxu0 0
        %1600 = vmatpush1.bf16.msra.mxu0 0
        %1601 = vmatprep.subr.bf16.mxu0 0
        %1602 = vmatpush1.bf16.msra.mxu0 0
        %1603 = vmatprep.subr.bf16.mxu0 0
        %1604 = vmatpush1.bf16.msra.mxu0 0
        %1605 = vmatprep.subr.bf16.mxu0 0
        %1606 = vmatpush1.bf16.msra.mxu0 0
        %1607 = vmatprep.subr.bf16.mxu0 0
        %1608 = vmatpush1.bf16.msra.mxu0 0
        %1609 = vmatprep.subr.bf16.mxu0 0
        %1610 = vmatpush1.bf16.msra.mxu0 0
        %1611 = vmatprep.subr.bf16.mxu0 0
        %1612 = vmatpush1.bf16.msra.mxu0 0
        %1613 = vmatprep.subr.bf16.mxu0 0
        %1614 = vmatpush1.bf16.msra.mxu0 0
        %1615 = vmatprep.subr.bf16.mxu0 0
        %1616 = vmatpush1.bf16.msra.mxu0 0
        %1617 = vmatprep.subr.bf16.mxu0 0
        %1618 = vmatpush1.bf16.msra.mxu0 0
        %1619 = vmatprep.subr.bf16.mxu0 0
        %1620 = vmatpush1.bf16.msra.mxu0 0
        %1621 = vmatprep.subr.bf16.mxu0 0
        %1622 = vmatpush1.bf16.msra.mxu0 0
        %1623 = vmatprep.subr.bf16.mxu0 0
        %1624 = vmatpush1.bf16.msra.mxu0 0
        %1625 = vmatprep.subr.bf16.mxu0 0
        %1626 = vmatpush1.bf16.msra.mxu0 0
        %1627 = vmatprep.mubr.bf16.mxu0 0
        %1628 = vmatmul.mubr.bf16.gmra.mrb[0].mxu0 %v1581
        %v1629 = vpop.f32.mrb[0].mxu0
        %v1630 = vadd.f32 0.0, %v1629
        %v1631 = vpop.f32.mrb[0].mxu0
        %v1632 = vpop.f32.mrb[0].mxu0
        %v1633 = vadd.f32 0.0, %v1632
        %v1634 = vpop.f32.mrb[0].mxu0
        %1635 = vmatprep.mubr.bf16.mxu0 0
        %1636 = vmatmul.mubr.bf16.gmra.mrb[0].mxu0 %v1584
        %v1637 = vpop.f32.mrb[0].mxu0
        %v1638 = vadd.f32 0.0, %v1637
        %v1639 = vpop.f32.mrb[0].mxu0
        %v1640 = vpop.f32.mrb[0].mxu0
        %v1641 = vadd.f32 0.0, %v1640
        %v1642 = vpop.f32.mrb[0].mxu0
        %1643 = vmatprep.mubr.bf16.mxu0 0
        %1644 = vmatmul.mubr.bf16.gmra.mrb[0].mxu0 %v1587
        %v1645 = vpop.f32.mrb[0].mxu0
        %v1646 = vadd.f32 0.0, %v1645
        %v1647 = vpop.f32.mrb[0].mxu0
        %v1648 = vpop.f32.mrb[0].mxu0
        %v1649 = vadd.f32 0.0, %v1648
        %v1650 = vpop.f32.mrb[0].mxu0
        %1651 = vmatprep.mubr.bf16.mxu0 0
        %1652 = vmatmul.mubr.bf16.gmra.mrb[0].mxu0 %v1590
        %v1653 = vpop.f32.mrb[0].mxu0
        %v1654 = vadd.f32 0.0, %v1653
        %v1655 = vpop.f32.mrb[0].mxu0
        %v1656 = vpop.f32.mrb[0].mxu0
        %v1657 = vadd.f32 0.0, %v1656
        %v1658 = vpop.f32.mrb[0].mxu0
        %1659 = vdwg.mxu0
        %v1660 = vadd.f32 %v1514, %v1630
        %v1661 = vadd.f32 %v1515, %v1633
        %v1662 = vadd.f32 %v1516, %v1638
        %v1663 = vadd.f32 %v1517, %v1641
        %v1664 = vadd.f32 %v1518, %v1646
        %v1665 = vadd.f32 %v1519, %v1649
        %v1666 = vadd.f32 %v1520, %v1654
        %v1667 = vadd.f32 %v1521, %v1657
        %s1668 = scalar_lea.vmem [#allocation2], 24
        %v1669 = vld [vmem:[%s1668] sm:$0xf]
        %v1670 = vld [vmem:[%s1668 + $0x4] sm:$0xf]
        %v1671 = vld [vmem:[%s1668 + $0xc] sm:$0xf]
        %v1672 = vld [vmem:[%s1668 + $0x10] sm:$0xf]
        %v1673 = vld [vmem:[%s1668 + $0x18] sm:$0xf]
        %v1674 = vld [vmem:[%s1668 + $0x1c] sm:$0xf]
        %v1675 = vld [vmem:[%s1668 + $0x24] sm:$0xf]
        %v1676 = vld [vmem:[%s1668 + $0x28] sm:$0xf]
        %s1677 = scalar_lea.vmem [#allocation9], 24
        %v1678 = vld [vmem:[%s1677] sm:$0xf]
        %v1687 = vunpack.c.l.b16 %v1669
        %v1688 = vunpack.c.l.b16 %v1670
        %v1689 = vunpack.c.l.b16 %v1671
        %v1690 = vunpack.c.l.b16 %v1672
        %v1691 = vunpack.c.l.b16 %v1673
        %v1692 = vunpack.c.l.b16 %v1674
        %v1693 = vunpack.c.l.b16 %v1675
        %v1694 = vunpack.c.l.b16 %v1676
        %v1695 = vpack.c.b16 %v1688, %v1687
        %v1696 = vpack.c.b16 %v1690, %v1689
        %v1697 = vpack.c.b16 %v1692, %v1691
        %v1698 = vpack.c.b16 %v1694, %v1693
        %v1700 = vsel %vm867, %v1695, 0
        %v1703 = vsel %vm867, %v1696, 0
        %v1706 = vsel %vm867, %v1697, 0
        %v1709 = vsel %vm867, %v1698, 0
        %v1712 = vsel %vm880, %v1678, 0
        %1714 = vmatprep.subr.bf16.mxu0 0
        %1715 = vmatpush1.bf16.msra.mxu0 %v1712
        %1716 = vmatprep.subr.bf16.mxu0 0
        %1717 = vmatpush1.bf16.msra.mxu0 0
        %1718 = vmatprep.subr.bf16.mxu0 0
        %1719 = vmatpush1.bf16.msra.mxu0 0
        %1720 = vmatprep.subr.bf16.mxu0 0
        %1721 = vmatpush1.bf16.msra.mxu0 0
        %1722 = vmatprep.subr.bf16.mxu0 0
        %1723 = vmatpush1.bf16.msra.mxu0 0
        %1724 = vmatprep.subr.bf16.mxu0 0
        %1725 = vmatpush1.bf16.msra.mxu0 0
        %1726 = vmatprep.subr.bf16.mxu0 0
        %1727 = vmatpush1.bf16.msra.mxu0 0
        %1728 = vmatprep.subr.bf16.mxu0 0
        %1729 = vmatpush1.bf16.msra.mxu0 0
        %1730 = vmatprep.subr.bf16.mxu0 0
        %1731 = vmatpush1.bf16.msra.mxu0 0
        %1732 = vmatprep.subr.bf16.mxu0 0
        %1733 = vmatpush1.bf16.msra.mxu0 0
        %1734 = vmatprep.subr.bf16.mxu0 0
        %1735 = vmatpush1.bf16.msra.mxu0 0
        %1736 = vmatprep.subr.bf16.mxu0 0
        %1737 = vmatpush1.bf16.msra.mxu0 0
        %1738 = vmatprep.subr.bf16.mxu0 0
        %1739 = vmatpush1.bf16.msra.mxu0 0
        %1740 = vmatprep.subr.bf16.mxu0 0
        %1741 = vmatpush1.bf16.msra.mxu0 0
        %1742 = vmatprep.subr.bf16.mxu0 0
        %1743 = vmatpush1.bf16.msra.mxu0 0
        %1744 = vmatprep.subr.bf16.mxu0 0
        %1745 = vmatpush1.bf16.msra.mxu0 0
        %1746 = vmatprep.mubr.bf16.mxu0 0
        %1747 = vmatmul.mubr.bf16.gmra.mrb[0].mxu0 %v1700
        %v1748 = vpop.f32.mrb[0].mxu0
        %v1749 = vadd.f32 0.0, %v1748
        %v1750 = vpop.f32.mrb[0].mxu0
        %v1751 = vpop.f32.mrb[0].mxu0
        %v1752 = vadd.f32 0.0, %v1751
        %v1753 = vpop.f32.mrb[0].mxu0
        %1754 = vmatprep.mubr.bf16.mxu0 0
        %1755 = vmatmul.mubr.bf16.gmra.mrb[0].mxu0 %v1703
        %v1756 = vpop.f32.mrb[0].mxu0
        %v1757 = vadd.f32 0.0, %v1756
        %v1758 = vpop.f32.mrb[0].mxu0
        %v1759 = vpop.f32.mrb[0].mxu0
        %v1760 = vadd.f32 0.0, %v1759
        %v1761 = vpop.f32.mrb[0].mxu0
        %1762 = vmatprep.mubr.bf16.mxu0 0
        %1763 = vmatmul.mubr.bf16.gmra.mrb[0].mxu0 %v1706
        %v1764 = vpop.f32.mrb[0].mxu0
        %v1765 = vadd.f32 0.0, %v1764
        %v1766 = vpop.f32.mrb[0].mxu0
        %v1767 = vpop.f32.mrb[0].mxu0
        %v1768 = vadd.f32 0.0, %v1767
        %v1769 = vpop.f32.mrb[0].mxu0
        %1770 = vmatprep.mubr.bf16.mxu0 0
        %1771 = vmatmul.mubr.bf16.gmra.mrb[0].mxu0 %v1709
        %v1772 = vpop.f32.mrb[0].mxu0
        %v1773 = vadd.f32 0.0, %v1772
        %v1774 = vpop.f32.mrb[0].mxu0
        %v1775 = vpop.f32.mrb[0].mxu0
        %v1776 = vadd.f32 0.0, %v1775
        %v1777 = vpop.f32.mrb[0].mxu0
        %1778 = vdwg.mxu0
        %v1779 = vadd.f32 %v1660, %v1749
        %v1780 = vadd.f32 %v1661, %v1752
        %v1781 = vadd.f32 %v1662, %v1757
        %v1782 = vadd.f32 %v1663, %v1760
        %v1783 = vadd.f32 %v1664, %v1765
        %v1784 = vadd.f32 %v1665, %v1768
        %v1785 = vadd.f32 %v1666, %v1773
        %v1786 = vadd.f32 %v1667, %v1776
        %v1787 = vld [vmem:[%s1668] sm:$0xf]
        %v1788 = vld [vmem:[%s1668 + $0x4] sm:$0xf]
        %v1789 = vld [vmem:[%s1668 + $0x8] sm:$0x1]
        %v1790 = vld [vmem:[%s1668 + $0xc] sm:$0xf]
        %v1791 = vld [vmem:[%s1668 + $0x10] sm:$0xf]
        %v1792 = vld [vmem:[%s1668 + $0x14] sm:$0x1]
        %v1793 = vld [vmem:[%s1668 + $0x18] sm:$0xf]
        %v1794 = vld [vmem:[%s1668 + $0x1c] sm:$0xf]
        %v1795 = vld [vmem:[%s1668 + $0x20] sm:$0x1]
        %v1796 = vld [vmem:[%s1668 + $0x24] sm:$0xf]
        %v1797 = vld [vmem:[%s1668 + $0x28] sm:$0xf]
        %v1798 = vld [vmem:[%s1668 + $0x2c] sm:$0x1]
        %v1800 = vshrl.u32 %v1787, 16
        %v1802 = vrot.slane %v1800, 4
        %v1803 = vshll.u32 %v1787, 16
        %v1805 = vrot.slane %v1803, 5
        %v1806 = vor.u32 %v1802, %v1805
        %v1807 = vrot.slane %v1806, 4
        %v1809 = vshll.u32 %v1788, 16
        %v1811 = vrot.slane %v1809, 5
        %v1812 = vsel %vm756, %v1807, %v1811
        %v1813 = vshrl.u32 %v1788, 16
        %v1815 = vrot.slane %v1813, 4
        %v1816 = vor.u32 %v1815, %v1811
        %v1817 = vrot.slane %v1816, 4
        %v1819 = vshll.u32 %v1789, 16
        %v1821 = vrot.slane %v1819, 5
        %v1822 = vsel %vm756, %v1817, %v1821
        %v1824 = vshrl.u32 %v1790, 16
        %v1826 = vrot.slane %v1824, 4
        %v1827 = vshll.u32 %v1790, 16
        %v1829 = vrot.slane %v1827, 5
        %v1830 = vor.u32 %v1826, %v1829
        %v1831 = vrot.slane %v1830, 4
        %v1833 = vshll.u32 %v1791, 16
        %v1835 = vrot.slane %v1833, 5
        %v1836 = vsel %vm756, %v1831, %v1835
        %v1837 = vshrl.u32 %v1791, 16
        %v1839 = vrot.slane %v1837, 4
        %v1840 = vor.u32 %v1839, %v1835
        %v1841 = vrot.slane %v1840, 4
        %v1843 = vshll.u32 %v1792, 16
        %v1845 = vrot.slane %v1843, 5
        %v1846 = vsel %vm756, %v1841, %v1845
        %v1848 = vshrl.u32 %v1793, 16
        %v1850 = vrot.slane %v1848, 4
        %v1851 = vshll.u32 %v1793, 16
        %v1853 = vrot.slane %v1851, 5
        %v1854 = vor.u32 %v1850, %v1853
        %v1855 = vrot.slane %v1854, 4
        %v1857 = vshll.u32 %v1794, 16
        %v1859 = vrot.slane %v1857, 5
        %v1860 = vsel %vm756, %v1855, %v1859
        %v1861 = vshrl.u32 %v1794, 16
        %v1863 = vrot.slane %v1861, 4
        %v1864 = vor.u32 %v1863, %v1859
        %v1865 = vrot.slane %v1864, 4
        %v1867 = vshll.u32 %v1795, 16
        %v1869 = vrot.slane %v1867, 5
        %v1870 = vsel %vm756, %v1865, %v1869
        %v1872 = vshrl.u32 %v1796, 16
        %v1874 = vrot.slane %v1872, 4
        %v1875 = vshll.u32 %v1796, 16
        %v1877 = vrot.slane %v1875, 5
        %v1878 = vor.u32 %v1874, %v1877
        %v1879 = vrot.slane %v1878, 4
        %v1881 = vshll.u32 %v1797, 16
        %v1883 = vrot.slane %v1881, 5
        %v1884 = vsel %vm756, %v1879, %v1883
        %v1885 = vshrl.u32 %v1797, 16
        %v1887 = vrot.slane %v1885, 4
        %v1888 = vor.u32 %v1887, %v1883
        %v1889 = vrot.slane %v1888, 4
        %v1891 = vshll.u32 %v1798, 16
        %v1893 = vrot.slane %v1891, 5
        %v1894 = vsel %vm756, %v1889, %v1893
        %s1895 = scalar_lea.vmem [#allocation9], 28
        %v1896 = vld [vmem:[%s1895] sm:$0xf]
        %v1897 = vunpack.c.l.b16 %v1812
        %v1898 = vunpack.c.l.b16 %v1822
        %v1899 = vunpack.c.l.b16 %v1836
        %v1900 = vunpack.c.l.b16 %v1846
        %v1901 = vunpack.c.l.b16 %v1860
        %v1902 = vunpack.c.l.b16 %v1870
        %v1903 = vunpack.c.l.b16 %v1884
        %v1904 = vunpack.c.l.b16 %v1894
        %v1905 = vpack.c.b16 %v1898, %v1897
        %v1906 = vpack.c.b16 %v1900, %v1899
        %v1907 = vpack.c.b16 %v1902, %v1901
        %v1908 = vpack.c.b16 %v1904, %v1903
        %v1910 = vsel %vm867, %v1905, 0
        %v1913 = vsel %vm867, %v1906, 0
        %v1916 = vsel %vm867, %v1907, 0
        %v1919 = vsel %vm867, %v1908, 0
        %v1922 = vsel %vm880, %v1896, 0
        %1924 = vmatprep.subr.bf16.mxu0 0
        %1925 = vmatpush1.bf16.msra.mxu0 %v1922
        %1926 = vmatprep.subr.bf16.mxu0 0
        %1927 = vmatpush1.bf16.msra.mxu0 0
        %1928 = vmatprep.subr.bf16.mxu0 0
        %1929 = vmatpush1.bf16.msra.mxu0 0
        %1930 = vmatprep.subr.bf16.mxu0 0
        %1931 = vmatpush1.bf16.msra.mxu0 0
        %1932 = vmatprep.subr.bf16.mxu0 0
        %1933 = vmatpush1.bf16.msra.mxu0 0
        %1934 = vmatprep.subr.bf16.mxu0 0
        %1935 = vmatpush1.bf16.msra.mxu0 0
        %1936 = vmatprep.subr.bf16.mxu0 0
        %1937 = vmatpush1.bf16.msra.mxu0 0
        %1938 = vmatprep.subr.bf16.mxu0 0
        %1939 = vmatpush1.bf16.msra.mxu0 0
        %1940 = vmatprep.subr.bf16.mxu0 0
        %1941 = vmatpush1.bf16.msra.mxu0 0
        %1942 = vmatprep.subr.bf16.mxu0 0
        %1943 = vmatpush1.bf16.msra.mxu0 0
        %1944 = vmatprep.subr.bf16.mxu0 0
        %1945 = vmatpush1.bf16.msra.mxu0 0
        %1946 = vmatprep.subr.bf16.mxu0 0
        %1947 = vmatpush1.bf16.msra.mxu0 0
        %1948 = vmatprep.subr.bf16.mxu0 0
        %1949 = vmatpush1.bf16.msra.mxu0 0
        %1950 = vmatprep.subr.bf16.mxu0 0
        %1951 = vmatpush1.bf16.msra.mxu0 0
        %1952 = vmatprep.subr.bf16.mxu0 0
        %1953 = vmatpush1.bf16.msra.mxu0 0
        %1954 = vmatprep.subr.bf16.mxu0 0
        %1955 = vmatpush1.bf16.msra.mxu0 0
        %1956 = vmatprep.mubr.bf16.mxu0 0
        %1957 = vmatmul.mubr.bf16.gmra.mrb[0].mxu0 %v1910
        %v1958 = vpop.f32.mrb[0].mxu0
        %v1959 = vadd.f32 0.0, %v1958
        %v1960 = vpop.f32.mrb[0].mxu0
        %v1961 = vpop.f32.mrb[0].mxu0
        %v1962 = vadd.f32 0.0, %v1961
        %v1963 = vpop.f32.mrb[0].mxu0
        %1964 = vmatprep.mubr.bf16.mxu0 0
        %1965 = vmatmul.mubr.bf16.gmra.mrb[0].mxu0 %v1913
        %v1966 = vpop.f32.mrb[0].mxu0
        %v1967 = vadd.f32 0.0, %v1966
        %v1968 = vpop.f32.mrb[0].mxu0
        %v1969 = vpop.f32.mrb[0].mxu0
        %v1970 = vadd.f32 0.0, %v1969
        %v1971 = vpop.f32.mrb[0].mxu0
        %1972 = vmatprep.mubr.bf16.mxu0 0
        %1973 = vmatmul.mubr.bf16.gmra.mrb[0].mxu0 %v1916
        %v1974 = vpop.f32.mrb[0].mxu0
        %v1975 = vadd.f32 0.0, %v1974
        %v1976 = vpop.f32.mrb[0].mxu0
        %v1977 = vpop.f32.mrb[0].mxu0
        %v1978 = vadd.f32 0.0, %v1977
        %v1979 = vpop.f32.mrb[0].mxu0
        %1980 = vmatprep.mubr.bf16.mxu0 0
        %1981 = vmatmul.mubr.bf16.gmra.mrb[0].mxu0 %v1919
        %v1982 = vpop.f32.mrb[0].mxu0
        %v1983 = vadd.f32 0.0, %v1982
        %v1984 = vpop.f32.mrb[0].mxu0
        %v1985 = vpop.f32.mrb[0].mxu0
        %v1986 = vadd.f32 0.0, %v1985
        %v1987 = vpop.f32.mrb[0].mxu0
        %1988 = vdwg.mxu0
        %v1989 = vadd.f32 %v1779, %v1959
        %v1990 = vadd.f32 %v1780, %v1962
        %v1991 = vadd.f32 %v1781, %v1967
        %v1992 = vadd.f32 %v1782, %v1970
        %v1993 = vadd.f32 %v1783, %v1975
        %v1994 = vadd.f32 %v1784, %v1978
        %v1995 = vadd.f32 %v1785, %v1983
        %v1996 = vadd.f32 %v1786, %v1986
        %v1997 = vld [vmem:[%s1668] sm:$0xe]
        %v1998 = vld [vmem:[%s1668 + $0xc] sm:$0xe]
        %v1999 = vld [vmem:[%s1668 + $0x18] sm:$0xe]
        %v2000 = vld [vmem:[%s1668 + $0x24] sm:$0xe]
        %v2013 = vrot.slane %v1997, 5
        %v2014 = vrot.slane %v2013, 4
        %v2015 = vrot.slane %v1788, 5
        %v2016 = vsel %vm1063, %v2014, %v2015
        %v2017 = vrot.slane %v2015, 4
        %v2018 = vrot.slane %v1789, 5
        %v2019 = vsel %vm1063, %v2017, %v2018
        %v2020 = vrot.slane %v1998, 5
        %v2021 = vrot.slane %v2020, 4
        %v2022 = vrot.slane %v1791, 5
        %v2023 = vsel %vm1063, %v2021, %v2022
        %v2024 = vrot.slane %v2022, 4
        %v2025 = vrot.slane %v1792, 5
        %v2026 = vsel %vm1063, %v2024, %v2025
        %v2027 = vrot.slane %v1999, 5
        %v2028 = vrot.slane %v2027, 4
        %v2029 = vrot.slane %v1794, 5
        %v2030 = vsel %vm1063, %v2028, %v2029
        %v2031 = vrot.slane %v2029, 4
        %v2032 = vrot.slane %v1795, 5
        %v2033 = vsel %vm1063, %v2031, %v2032
        %v2034 = vrot.slane %v2000, 5
        %v2035 = vrot.slane %v2034, 4
        %v2036 = vrot.slane %v1797, 5
        %v2037 = vsel %vm1063, %v2035, %v2036
        %v2038 = vrot.slane %v2036, 4
        %v2039 = vrot.slane %v1798, 5
        %v2040 = vsel %vm1063, %v2038, %v2039
        %s2041 = scalar_lea.vmem [#allocation9], 32
        %v2042 = vld [vmem:[%s2041] sm:$0xf]
        %v2043 = vunpack.c.l.b16 %v2016
        %v2044 = vunpack.c.l.b16 %v2019
        %v2045 = vunpack.c.l.b16 %v2023
        %v2046 = vunpack.c.l.b16 %v2026
        %v2047 = vunpack.c.l.b16 %v2030
        %v2048 = vunpack.c.l.b16 %v2033
        %v2049 = vunpack.c.l.b16 %v2037
        %v2050 = vunpack.c.l.b16 %v2040
        %v2051 = vpack.c.b16 %v2044, %v2043
        %v2052 = vpack.c.b16 %v2046, %v2045
        %v2053 = vpack.c.b16 %v2048, %v2047
        %v2054 = vpack.c.b16 %v2050, %v2049
        %v2056 = vsel %vm867, %v2051, 0
        %v2059 = vsel %vm867, %v2052, 0
        %v2062 = vsel %vm867, %v2053, 0
        %v2065 = vsel %vm867, %v2054, 0
        %v2068 = vsel %vm880, %v2042, 0
        %2070 = vmatprep.subr.bf16.mxu0 0
        %2071 = vmatpush1.bf16.msra.mxu0 %v2068
        %2072 = vmatprep.subr.bf16.mxu0 0
        %2073 = vmatpush1.bf16.msra.mxu0 0
        %2074 = vmatprep.subr.bf16.mxu0 0
        %2075 = vmatpush1.bf16.msra.mxu0 0
        %2076 = vmatprep.subr.bf16.mxu0 0
        %2077 = vmatpush1.bf16.msra.mxu0 0
        %2078 = vmatprep.subr.bf16.mxu0 0
        %2079 = vmatpush1.bf16.msra.mxu0 0
        %2080 = vmatprep.subr.bf16.mxu0 0
        %2081 = vmatpush1.bf16.msra.mxu0 0
        %2082 = vmatprep.subr.bf16.mxu0 0
        %2083 = vmatpush1.bf16.msra.mxu0 0
        %2084 = vmatprep.subr.bf16.mxu0 0
        %2085 = vmatpush1.bf16.msra.mxu0 0
        %2086 = vmatprep.subr.bf16.mxu0 0
        %2087 = vmatpush1.bf16.msra.mxu0 0
        %2088 = vmatprep.subr.bf16.mxu0 0
        %2089 = vmatpush1.bf16.msra.mxu0 0
        %2090 = vmatprep.subr.bf16.mxu0 0
        %2091 = vmatpush1.bf16.msra.mxu0 0
        %2092 = vmatprep.subr.bf16.mxu0 0
        %2093 = vmatpush1.bf16.msra.mxu0 0
        %2094 = vmatprep.subr.bf16.mxu0 0
        %2095 = vmatpush1.bf16.msra.mxu0 0
        %2096 = vmatprep.subr.bf16.mxu0 0
        %2097 = vmatpush1.bf16.msra.mxu0 0
        %2098 = vmatprep.subr.bf16.mxu0 0
        %2099 = vmatpush1.bf16.msra.mxu0 0
        %2100 = vmatprep.subr.bf16.mxu0 0
        %2101 = vmatpush1.bf16.msra.mxu0 0
        %2102 = vmatprep.mubr.bf16.mxu0 0
        %2103 = vmatmul.mubr.bf16.gmra.mrb[0].mxu0 %v2056
        %v2104 = vpop.f32.mrb[0].mxu0
        %v2105 = vadd.f32 0.0, %v2104
        %v2106 = vpop.f32.mrb[0].mxu0
        %v2107 = vpop.f32.mrb[0].mxu0
        %v2108 = vadd.f32 0.0, %v2107
        %v2109 = vpop.f32.mrb[0].mxu0
        %2110 = vmatprep.mubr.bf16.mxu0 0
        %2111 = vmatmul.mubr.bf16.gmra.mrb[0].mxu0 %v2059
        %v2112 = vpop.f32.mrb[0].mxu0
        %v2113 = vadd.f32 0.0, %v2112
        %v2114 = vpop.f32.mrb[0].mxu0
        %v2115 = vpop.f32.mrb[0].mxu0
        %v2116 = vadd.f32 0.0, %v2115
        %v2117 = vpop.f32.mrb[0].mxu0
        %2118 = vmatprep.mubr.bf16.mxu0 0
        %2119 = vmatmul.mubr.bf16.gmra.mrb[0].mxu0 %v2062
        %v2120 = vpop.f32.mrb[0].mxu0
        %v2121 = vadd.f32 0.0, %v2120
        %v2122 = vpop.f32.mrb[0].mxu0
        %v2123 = vpop.f32.mrb[0].mxu0
        %v2124 = vadd.f32 0.0, %v2123
        %v2125 = vpop.f32.mrb[0].mxu0
        %2126 = vmatprep.mubr.bf16.mxu0 0
        %2127 = vmatmul.mubr.bf16.gmra.mrb[0].mxu0 %v2065
        %v2128 = vpop.f32.mrb[0].mxu0
        %v2129 = vadd.f32 0.0, %v2128
        %v2130 = vpop.f32.mrb[0].mxu0
        %v2131 = vpop.f32.mrb[0].mxu0
        %v2132 = vadd.f32 0.0, %v2131
        %v2133 = vpop.f32.mrb[0].mxu0
        %2134 = vdwg.mxu0
        %v2135 = vadd.f32 %v1989, %v2105
        %v2136 = vadd.f32 %v1990, %v2108
        %v2137 = vadd.f32 %v1991, %v2113
        %v2138 = vadd.f32 %v1992, %v2116
        %v2139 = vadd.f32 %v1993, %v2121
        %v2140 = vadd.f32 %v1994, %v2124
        %v2141 = vadd.f32 %v1995, %v2129
        %v2142 = vadd.f32 %v1996, %v2132
        %v2143 = vld [vmem:[#allocation11] sm:$0x1]
        %v2145 = vlaneseq
        %v2146 = vshrl.u32 %v2145, 7
        %v2147 = vsub.s32 0, %v2146
        %v2148 = vrot.slane %v2143, %v2147
        %v2150 = vadd.f32 %v2135, %v2148
        %v2151 = vadd.f32 %v2136, %v2148
        %v2152 = vadd.f32 %v2137, %v2148
        %v2153 = vadd.f32 %v2138, %v2148
        %v2154 = vadd.f32 %v2139, %v2148
        %v2155 = vadd.f32 %v2140, %v2148
        %v2156 = vadd.f32 %v2141, %v2148
        %v2157 = vadd.f32 %v2142, %v2148
        %vm2158 = vcmp.ge.f32.partialorder %v2150, 0.0
        %vm2159 = vcmp.ge.f32.partialorder %v2151, 0.0
        %vm2160 = vcmp.ge.f32.partialorder %v2152, 0.0
        %vm2161 = vcmp.ge.f32.partialorder %v2153, 0.0
        %vm2162 = vcmp.ge.f32.partialorder %v2154, 0.0
        %vm2163 = vcmp.ge.f32.partialorder %v2155, 0.0
        %vm2164 = vcmp.ge.f32.partialorder %v2156, 0.0
        %vm2165 = vcmp.ge.f32.partialorder %v2157, 0.0
        %v2166 = vld [vmem:[#allocation12] sm:$0x1]
        %v2168 = vlaneseq
        %v2169 = vshrl.u32 %v2168, 7
        %v2170 = vsub.s32 0, %v2169
        %v2171 = vrot.slane %v2166, %v2170
        %v2173 = vmul.f32 %v2171, %v2150
        %v2174 = vmul.f32 %v2171, %v2151
        %v2175 = vmul.f32 %v2171, %v2152
        %v2176 = vmul.f32 %v2171, %v2153
        %v2177 = vmul.f32 %v2171, %v2154
        %v2178 = vmul.f32 %v2171, %v2155
        %v2179 = vmul.f32 %v2171, %v2156
        %v2180 = vmul.f32 %v2171, %v2157
        %v2181 = vsel %vm2158, %v2150, %v2173
        %v2182 = vsel %vm2159, %v2151, %v2174
        %v2183 = vsel %vm2160, %v2152, %v2175
        %v2184 = vsel %vm2161, %v2153, %v2176
        %v2185 = vsel %vm2162, %v2154, %v2177
        %v2186 = vsel %vm2163, %v2155, %v2178
        %v2187 = vsel %vm2164, %v2156, %v2179
        %v2188 = vsel %vm2165, %v2157, %v2180
        %vm2189 = vcmask 130048
        %2190 = vst.msk [vmem:[%s439] sm:$0xff] %vm2189, %v2181
        %2191 = vst.msk [vmem:[%s439 + $0x8] sm:$0xff] %vm2189, %v2182
        %2192 = vst.msk [vmem:[%s439 + $0x20] sm:$0xff] %vm2189, %v2183
        %2193 = vst.msk [vmem:[%s439 + $0x28] sm:$0xff] %vm2189, %v2184
        %2194 = vst.msk [vmem:[%s439 + $0x40] sm:$0xff] %vm2189, %v2185
        %2195 = vst.msk [vmem:[%s439 + $0x48] sm:$0xff] %vm2189, %v2186
        %2196 = vst.msk [vmem:[%s439 + $0x60] sm:$0xff] %vm2189, %v2187
        %2197 = vst.msk [vmem:[%s439 + $0x68] sm:$0xff] %vm2189, %v2188
        %2206 = vrot.lane.b32.xlu0 %v2181, 112
        %v2207 = vpop.permute.xlu0 %2206
        %2208 = vrot.lane.b32.xlu0 %v2182, 112
        %v2209 = vpop.permute.xlu0 %2208
        %2210 = vrot.lane.b32.xlu0 %v2183, 112
        %v2211 = vpop.permute.xlu0 %2210
        %2212 = vrot.lane.b32.xlu0 %v2184, 112
        %v2213 = vpop.permute.xlu0 %2212
        %2214 = vrot.lane.b32.xlu0 %v2185, 112
        %v2215 = vpop.permute.xlu0 %2214
        %2216 = vrot.lane.b32.xlu0 %v2186, 112
        %v2217 = vpop.permute.xlu0 %2216
        %2218 = vrot.lane.b32.xlu0 %v2187, 112
        %v2219 = vpop.permute.xlu0 %2218
        %2220 = vrot.lane.b32.xlu0 %v2188, 112
        %v2221 = vpop.permute.xlu0 %2220
        %s2230 = scalar_lea.vmem %s439, 16 [#allocation14]
        %2231 = vst.msk [vmem:[%s2230] sm:$0xff] %vm2189, %v2207
        %2232 = vst.msk [vmem:[%s2230 + $0x8] sm:$0xff] %vm2189, %v2209
        %2233 = vst.msk [vmem:[%s2230 + $0x20] sm:$0xff] %vm2189, %v2211
        %2234 = vst.msk [vmem:[%s2230 + $0x28] sm:$0xff] %vm2189, %v2213
        %2235 = vst.msk [vmem:[%s2230 + $0x40] sm:$0xff] %vm2189, %v2215
        %2236 = vst.msk [vmem:[%s2230 + $0x48] sm:$0xff] %vm2189, %v2217
        %2237 = vst.msk [vmem:[%s2230 + $0x60] sm:$0xff] %vm2189, %v2219
        %2238 = vst.msk [vmem:[%s2230 + $0x68] sm:$0xff] %vm2189, %v2221
        %s2239 = sand.u32 %s215, 1
        %s2240 = scalar_lea.sflag [#allocation5], %s2239
        %s2241 = sand.u32 %s215, 1
        %s2242 = smul.addr %s2241, 128
        %s2243 = scalar_lea.vmem [#allocation14], %s2242
        // Predicated region
        $region85: #{tpu_custom_call.1} parent=43 // pred_check
          %p2244 = pneg %p225
        $region86: #{tpu_custom_call.1} parent=43 // pred_check_branch
          %2246 = sbr.rel (%p2244) target = $region88
        $region87: #{tpu_custom_call.1} parent=43 // pred_region
          %s2247 = smul.u32 %s32, 4
          %s2248 = sadd.s32 %s2247, %s33
          %s2250 = ssub.s32 2048, 2048
          %2251 = vsyncadd %s2240, %s2250
          %s2252 = smul.addr %s2248, 16
          %s2253 = smul.addr %s2252, 128
          %s2254 = scalar_lea.hbm %s6, %s2253
          %s2255 = sshll.u32 %s2243, 4
          %s2256 = int_to_ptr.vmem [resolvable:$true] %s2255
          %2261 = dma.vmem_to_hbm [thread:$0]  %s2256, 2048, %s2254, %s2240, 128, 128, 8
        $region88: #{tpu_custom_call.1} parent=43 // pred_fallthru
          _
      $region44: #{tpu_custom_call.1} parent=5 // pred_fallthru
        _
      %p2262 = scmp.le.s32.totalorder 2, %s23
      // Predicated region
      $region89: #{tpu_custom_call.1} parent=5 // pred_check
        %p2263 = pneg %p2262
      $region90: #{tpu_custom_call.1} parent=5 // pred_check_branch
        %2265 = sbr.rel (%p2263) target = $region92
      $region91: #{tpu_custom_call.1} parent=5 // pred_region
        %s2266 = ssub.s32 %s23, 2
        // Predicated region
        $region93: #{tpu_custom_call.1} parent=91 // pred_check
          %p2267 = pneg %p231
        $region94: #{tpu_custom_call.1} parent=91 // pred_check_branch
          %2269 = sbr.rel (%p2267) target = $region96
        $region95: #{tpu_custom_call.1} parent=91 // pred_region
          %s2270 = sand.u32 %s216, 1
          %s2271 = scalar_lea.sflag [#allocation5], %s2270
          %s2272 = sand.u32 %s216, 1
          %s2273 = smul.addr %s2272, 128
          %s2274 = scalar_lea.vmem [#allocation14], %s2273
          %2275 = dma.done %s2271, 2048
        $region96: #{tpu_custom_call.1} parent=91 // pred_fallthru
          _
      $region92: #{tpu_custom_call.1} parent=5 // pred_fallthru
        _
    $region6: #{tpu_custom_call.1} parent=1 // loop_footer
      %s27 = sadd.s32 1, %s23
    $region7: #{tpu_custom_call.1} parent=1 // loop_footer_branch
      %22 = sbr.rel target = $region3
    $region8: #{tpu_custom_call.1} parent=1 // loop_exit
      _
    %2276 = vsyncpa [#allocation4], 1
    %s2277 = scalar_lea.sflag [#allocation4], 1
    %2278 = vsyncpa %s2277, 1
    %2279 = vsyncpa [#allocation7], 1
    %s2280 = scalar_lea.sflag [#allocation7], 1
    %2281 = vsyncpa %s2280, 1
    %2282 = vsyncpa [#allocation10], 1
    %2283 = vsyncpa [#allocation13], 1
    %2284 = vsyncpa [#allocation5], 1
    %s2285 = scalar_lea.sflag [#allocation5], 1
    %2286 = vsyncpa %s2285, 1

</llo_original>
